<compile_context>
chip_gen: v5e
topology: v5e:2x2
jax: 0.10.0
libtpu: 0.0.40
codegen_flags: <defaults>
</compile_context>

<pallas_src>
import functools
import math

import jax
import jax.numpy as jnp
from jax import lax
from jax.experimental import pallas as pl
from jax.experimental.pallas import tpu as pltpu


# ---------------------------------------------------------------------------
# Kernel: one row slab (block_b batch elements) -> projections + attention + fc
# ---------------------------------------------------------------------------
def _mha_kernel(q_ref, k_ref, v_ref, wq_ref, wk_ref, wv_ref, wfc_ref, bfc_ref,
                out_ref, *, heads, seq_len, block_b):
    E = q_ref.shape[-1]
    D = E // heads

    # Whole-slab, lane-dense projections: (block_b*L, E) rows feed the MXU at
    # once (amortizes MXU fill/drain and per-step pipeline overhead).
    # 1/sqrt(D) is already folded into wq.
    qp = jnp.dot(q_ref[...], wq_ref[...], preferred_element_type=jnp.float32)
    kp = jnp.dot(k_ref[...], wk_ref[...], preferred_element_type=jnp.float32)
    vp = jnp.dot(v_ref[...], wv_ref[...], preferred_element_type=jnp.float32)

    wfc = wfc_ref[...]          # (E, E), loaded once
    bias = bfc_ref[...]         # (1, E)

    # Attention is independent per (batch element, head): static sublane / lane
    # slices of the projected slabs.  fc_output is accumulated per head — no
    # lane-axis concat of (L, D) tiles.
    for b in range(block_b):
        r0 = b * seq_len
        rows = slice(r0, r0 + seq_len)
        y_b = None
        for h in range(heads):
            cols = slice(h * D, (h + 1) * D)
            qh = qp[rows, cols]
            kh = kp[rows, cols]
            vh = vp[rows, cols]

            # NT matmul: contract the last dims (no explicit k.T materialized).
            s = lax.dot_general(qh, kh, (((1,), (1,)), ((), ())),
                                preferred_element_type=jnp.float32)   # (L, L)
            # TODO(synk): mask path (masked_fill(mask == 0, -e)) not
            # implemented; this reproduces the mask=None forward only.

            # Numerically stable softmax; normalize the small (L, D) head
            # output with the exact EUP reciprocal (separate issue slot).
            m = jnp.max(s, axis=-1, keepdims=True)
            p = jnp.exp(s - m)
            l = jnp.sum(p, axis=-1, keepdims=True)
            oh = jnp.dot(p, vh, preferred_element_type=jnp.float32)   # (L, D)
            oh = oh * pl.reciprocal(l)

            # fc_output contribution of this head: (L, D) @ (D, E), using a
            # static, sublane-aligned row slice of w_fc.
            yh = jnp.dot(oh, wfc[cols, :], preferred_element_type=jnp.float32)
            y_b = yh if y_b is None else y_b + yh

        out_ref[rows, :] = (y_b + bias).astype(out_ref.dtype)


# ---------------------------------------------------------------------------
# Wrapper
# ---------------------------------------------------------------------------
def _pick_block_b(batch, seq_len, target_rows=256):
    """Batch elements per grid step: aim for ~target_rows rows per step.

    Tiny problems collapse to a single step (removes per-step overhead on
    v5e/v6e); large B naturally yields >=2 parallel blocks for v7x's two TCs.
    """
    cap = max(1, target_rows // max(seq_len, 1))
    bb = min(batch, cap)
    while batch % bb:
        bb -= 1
    return bb


def multi_head_attention(q, k, v, params, heads, *, block_b=None):
    B, L, E = q.shape
    D = E // heads
    assert D * heads == E, "head_dim*heads must be equal to embed_size"
    assert L % 8 == 0, "seq length must be a multiple of 8 (sublane tile)"

    if block_b is None:
        block_b = _pick_block_b(B, L)
    assert B % block_b == 0
    num_blocks = B // block_b
    rows = block_b * L

    # Flatten batch+seq so every grid step feeds the MXU a (block_b*L, E) slab.
    # (Last dim unchanged -> free metadata reshapes in the wrapper.)
    qf = q.reshape(B * L, E)
    kf = k.reshape(B * L, E)
    vf = v.reshape(B * L, E)

    kernel = functools.partial(_mha_kernel, heads=heads, seq_len=L,
                               block_b=block_b)

    out = pl.pallas_call(
        kernel,
        out_shape=jax.ShapeDtypeStruct((B * L, E), q.dtype),
        grid=(num_blocks,),
        in_specs=[
            pl.BlockSpec((rows, E), lambda i: (i, 0)),   # q row slab
            pl.BlockSpec((rows, E), lambda i: (i, 0)),   # k row slab
            pl.BlockSpec((rows, E), lambda i: (i, 0)),   # v row slab
            pl.BlockSpec((E, E), lambda i: (0, 0)),      # wq (block-diag, scaled)
            pl.BlockSpec((E, E), lambda i: (0, 0)),      # wk (block-diag)
            pl.BlockSpec((E, E), lambda i: (0, 0)),      # wv (block-diag)
            pl.BlockSpec((E, E), lambda i: (0, 0)),      # w_fc
            pl.BlockSpec((1, E), lambda i: (0, 0)),      # b_fc
        ],
        out_specs=pl.BlockSpec((rows, E), lambda i: (i, 0)),
        compiler_params=pltpu.CompilerParams(
            dimension_semantics=("parallel",)),
    )(qf, kf, vf, params["wq_bd"], params["wk_bd"], params["wv_bd"],
      params["w_fc"], params["b_fc"])

    return out.reshape(B, L, E)


# ---------------------------------------------------------------------------
# Parameter init (deterministic, PyTorch-Linear-style uniform bounds).
# The block-diagonal kron weights (with the attention scale folded into Wq)
# are built ONCE here, not per forward call.
# ---------------------------------------------------------------------------
def init_params(key, embed_size, heads):
    D = embed_size // heads
    ks = jax.random.split(key, 5)
    bd = 1.0 / math.sqrt(D)
    be = 1.0 / math.sqrt(embed_size)
    # weights stored as (in, out) so kernels compute x @ w (== x @ W.T in torch)
    wq = jax.random.uniform(ks[0], (D, D), jnp.float32, -bd, bd)
    wk = jax.random.uniform(ks[1], (D, D), jnp.float32, -bd, bd)
    wv = jax.random.uniform(ks[2], (D, D), jnp.float32, -bd, bd)
    eye = jnp.eye(heads, dtype=jnp.float32)
    return {
        # raw per-head weights (reference math)
        "wq": wq, "wk": wk, "wv": wv,
        # precomputed lane-dense block-diagonal kernel operands
        "wq_bd": jnp.kron(eye, wq / math.sqrt(D)),
        "wk_bd": jnp.kron(eye, wk),
        "wv_bd": jnp.kron(eye, wv),
        "w_fc": jax.random.uniform(ks[3], (embed_size, embed_size),
                                   jnp.float32, -be, be),
        "b_fc": jax.random.uniform(ks[4], (1, embed_size), jnp.float32, -be, be),
    }


# ---------------------------------------------------------------------------
# Pure-JAX reference (same math) for a correctness check
# ---------------------------------------------------------------------------
def ref_forward(q, k, v, params, heads):
    B, L, E = q.shape
    D = E // heads

    def proj_split(x, w):
        xs = x.reshape(B, L, heads, D)
        return jnp.einsum("blhd,de->bhle", xs, w)

    qp = proj_split(q, params["wq"])
    kp = proj_split(k, params["wk"])
    vp = proj_split(v, params["wv"])
    score = jnp.einsum("bhld,bhmd->bhlm", qp, kp) / math.sqrt(D)
    p = jax.nn.softmax(score, axis=-1)
    o = jnp.einsum("bhlm,bhmd->bhld", p, vp)
    o = o.transpose(0, 2, 1, 3).reshape(B, L, E)
    return o @ params["w_fc"] + params["b_fc"][0]


if __name__ == "__main__":
    B, L, E, H = 2, 16, 32, 4  # batch, seq, embed_size, heads (head_dim = 8)

    key = jax.random.PRNGKey(0)
    kq, kk, kv, kp = jax.random.split(key, 4)
    q = jax.random.normal(kq, (B, L, E), jnp.float32)
    k = jax.random.normal(kk, (B, L, E), jnp.float32)
    v = jax.random.normal(kv, (B, L, E), jnp.float32)
    params = init_params(kp, E, H)

    out = multi_head_attention(q, k, v, params, H)
    out = jax.block_until_ready(out)

    ref = ref_forward(q, k, v, params, H)
    assert out.shape == (B, L, E)
    assert jnp.allclose(out, ref, atol=1e-4, rtol=1e-4), "mismatch vs reference"

    print("KERNEL_OK")
</pallas_src>

<mosaic_0001>
module attributes {stable_mosaic.version = 11 : i64} {
  func.func @_mha_kernel(%arg0: i32, %arg1: memref<32x32xf32, #tpu.memory_space<vmem>>, %arg2: memref<32x32xf32, #tpu.memory_space<vmem>>, %arg3: memref<32x32xf32, #tpu.memory_space<vmem>>, %arg4: memref<32x32xf32, #tpu.memory_space<vmem>>, %arg5: memref<32x32xf32, #tpu.memory_space<vmem>>, %arg6: memref<32x32xf32, #tpu.memory_space<vmem>>, %arg7: memref<32x32xf32, #tpu.memory_space<vmem>>, %arg8: memref<1x32xf32, #tpu.memory_space<vmem>>, %arg9: memref<32x32xf32, #tpu.memory_space<vmem>>) attributes {dimension_semantics = [#tpu.dimension_semantics<parallel>], iteration_bounds = array<i64: 1>, scalar_prefetch = 0 : i64, scratch_operands = 0 : i64, tpu.core_type = #tpu.core_type<tc>, window_params = [{transform_indices = @transform_0, window_bounds = array<i64: 32, 32>}, {transform_indices = @transform_1, window_bounds = array<i64: 32, 32>}, {transform_indices = @transform_2, window_bounds = array<i64: 32, 32>}, {pipeline_mode = #tpu.pipeline_mode<synchronous>, transform_indices = @transform_3, window_bounds = array<i64: 32, 32>}, {pipeline_mode = #tpu.pipeline_mode<synchronous>, transform_indices = @transform_4, window_bounds = array<i64: 32, 32>}, {pipeline_mode = #tpu.pipeline_mode<synchronous>, transform_indices = @transform_5, window_bounds = array<i64: 32, 32>}, {pipeline_mode = #tpu.pipeline_mode<synchronous>, transform_indices = @transform_6, window_bounds = array<i64: 32, 32>}, {pipeline_mode = #tpu.pipeline_mode<synchronous>, transform_indices = @transform_7, window_bounds = array<i64: 1, 32>}, {transform_indices = @transform_8, window_bounds = array<i64: 32, 32>}]} {
    %c0 = arith.constant 0 : index
    %c0_0 = arith.constant 0 : index
    %0 = vector.load %arg1[%c0, %c0_0] : memref<32x32xf32, #tpu.memory_space<vmem>>, vector<32x32xf32>
    %c0_1 = arith.constant 0 : index
    %c0_2 = arith.constant 0 : index
    %1 = vector.load %arg4[%c0_1, %c0_2] : memref<32x32xf32, #tpu.memory_space<vmem>>, vector<32x32xf32>
    %cst = arith.constant dense<0.000000e+00> : vector<32x32xf32>
    %2 = tpu.matmul %0, %1, %cst {dimension_numbers = #tpu.dot_dimension_numbers<[1], [0], [0], [1], [0, 0, 1, 1], [], []>} : vector<32x32xf32>, vector<32x32xf32>, vector<32x32xf32> -> vector<32x32xf32>
    %c0_3 = arith.constant 0 : index
    %c0_4 = arith.constant 0 : index
    %3 = vector.load %arg2[%c0_3, %c0_4] : memref<32x32xf32, #tpu.memory_space<vmem>>, vector<32x32xf32>
    %c0_5 = arith.constant 0 : index
    %c0_6 = arith.constant 0 : index
    %4 = vector.load %arg5[%c0_5, %c0_6] : memref<32x32xf32, #tpu.memory_space<vmem>>, vector<32x32xf32>
    %cst_7 = arith.constant dense<0.000000e+00> : vector<32x32xf32>
    %5 = tpu.matmul %3, %4, %cst_7 {dimension_numbers = #tpu.dot_dimension_numbers<[1], [0], [0], [1], [0, 0, 1, 1], [], []>} : vector<32x32xf32>, vector<32x32xf32>, vector<32x32xf32> -> vector<32x32xf32>
    %c0_8 = arith.constant 0 : index
    %c0_9 = arith.constant 0 : index
    %6 = vector.load %arg3[%c0_8, %c0_9] : memref<32x32xf32, #tpu.memory_space<vmem>>, vector<32x32xf32>
    %c0_10 = arith.constant 0 : index
    %c0_11 = arith.constant 0 : index
    %7 = vector.load %arg6[%c0_10, %c0_11] : memref<32x32xf32, #tpu.memory_space<vmem>>, vector<32x32xf32>
    %cst_12 = arith.constant dense<0.000000e+00> : vector<32x32xf32>
    %8 = tpu.matmul %6, %7, %cst_12 {dimension_numbers = #tpu.dot_dimension_numbers<[1], [0], [0], [1], [0, 0, 1, 1], [], []>} : vector<32x32xf32>, vector<32x32xf32>, vector<32x32xf32> -> vector<32x32xf32>
    %c0_13 = arith.constant 0 : index
    %c0_14 = arith.constant 0 : index
    %9 = vector.load %arg7[%c0_13, %c0_14] : memref<32x32xf32, #tpu.memory_space<vmem>>, vector<32x32xf32>
    %c0_15 = arith.constant 0 : index
    %c0_16 = arith.constant 0 : index
    %10 = vector.load %arg8[%c0_15, %c0_16] : memref<1x32xf32, #tpu.memory_space<vmem>>, vector<1x32xf32>
    %11 = vector.extract_strided_slice %2 {offsets = [0, 0], sizes = [16, 8], strides = [1, 1]} : vector<32x32xf32> to vector<16x8xf32>
    %12 = vector.extract_strided_slice %5 {offsets = [0, 0], sizes = [16, 8], strides = [1, 1]} : vector<32x32xf32> to vector<16x8xf32>
    %13 = vector.extract_strided_slice %8 {offsets = [0, 0], sizes = [16, 8], strides = [1, 1]} : vector<32x32xf32> to vector<16x8xf32>
    %cst_17 = arith.constant dense<0.000000e+00> : vector<16x16xf32>
    %14 = tpu.matmul %11, %12, %cst_17 {dimension_numbers = #tpu.dot_dimension_numbers<[1], [1], [0], [0], [0, 0, 1, 0], [], []>} : vector<16x8xf32>, vector<16x8xf32>, vector<16x16xf32> -> vector<16x16xf32>
    %cst_18 = arith.constant dense<0xFF800000> : vector<16xf32>
    %15 = vector.multi_reduction <maximumf>, %14, %cst_18 [1] : vector<16x16xf32> to vector<16xf32>
    %16 = vector.shape_cast %15 : vector<16xf32> to vector<16x1xf32>
    %17 = vector.broadcast %16 : vector<16x1xf32> to vector<16x16xf32>
    %18 = arith.subf %14, %17 : vector<16x16xf32>
    %19 = math.exp %18 : vector<16x16xf32>
    %cst_19 = arith.constant dense<0.000000e+00> : vector<16xf32>
    %20 = vector.multi_reduction <add>, %19, %cst_19 [1] : vector<16x16xf32> to vector<16xf32>
    %21 = vector.shape_cast %20 : vector<16xf32> to vector<16x1xf32>
    %cst_20 = arith.constant dense<0.000000e+00> : vector<16x8xf32>
    %22 = tpu.matmul %19, %13, %cst_20 {dimension_numbers = #tpu.dot_dimension_numbers<[1], [0], [0], [1], [0, 0, 1, 1], [], []>} : vector<16x16xf32>, vector<16x8xf32>, vector<16x8xf32> -> vector<16x8xf32>
    %23 = tpu.reciprocal %21 : vector<16x1xf32> -> vector<16x1xf32>
    %24 = vector.broadcast %23 : vector<16x1xf32> to vector<16x8xf32>
    %25 = arith.mulf %22, %24 : vector<16x8xf32>
    %26 = vector.extract_strided_slice %9 {offsets = [0, 0], sizes = [8, 32], strides = [1, 1]} : vector<32x32xf32> to vector<8x32xf32>
    %cst_21 = arith.constant dense<0.000000e+00> : vector<16x32xf32>
    %27 = tpu.matmul %25, %26, %cst_21 {dimension_numbers = #tpu.dot_dimension_numbers<[1], [0], [0], [1], [0, 0, 1, 1], [], []>} : vector<16x8xf32>, vector<8x32xf32>, vector<16x32xf32> -> vector<16x32xf32>
    %28 = vector.extract_strided_slice %2 {offsets = [0, 8], sizes = [16, 8], strides = [1, 1]} : vector<32x32xf32> to vector<16x8xf32>
    %29 = vector.extract_strided_slice %5 {offsets = [0, 8], sizes = [16, 8], strides = [1, 1]} : vector<32x32xf32> to vector<16x8xf32>
    %30 = vector.extract_strided_slice %8 {offsets = [0, 8], sizes = [16, 8], strides = [1, 1]} : vector<32x32xf32> to vector<16x8xf32>
    %cst_22 = arith.constant dense<0.000000e+00> : vector<16x16xf32>
    %31 = tpu.matmul %28, %29, %cst_22 {dimension_numbers = #tpu.dot_dimension_numbers<[1], [1], [0], [0], [0, 0, 1, 0], [], []>} : vector<16x8xf32>, vector<16x8xf32>, vector<16x16xf32> -> vector<16x16xf32>
    %cst_23 = arith.constant dense<0xFF800000> : vector<16xf32>
    %32 = vector.multi_reduction <maximumf>, %31, %cst_23 [1] : vector<16x16xf32> to vector<16xf32>
    %33 = vector.shape_cast %32 : vector<16xf32> to vector<16x1xf32>
    %34 = vector.broadcast %33 : vector<16x1xf32> to vector<16x16xf32>
    %35 = arith.subf %31, %34 : vector<16x16xf32>
    %36 = math.exp %35 : vector<16x16xf32>
    %cst_24 = arith.constant dense<0.000000e+00> : vector<16xf32>
    %37 = vector.multi_reduction <add>, %36, %cst_24 [1] : vector<16x16xf32> to vector<16xf32>
    %38 = vector.shape_cast %37 : vector<16xf32> to vector<16x1xf32>
    %cst_25 = arith.constant dense<0.000000e+00> : vector<16x8xf32>
    %39 = tpu.matmul %36, %30, %cst_25 {dimension_numbers = #tpu.dot_dimension_numbers<[1], [0], [0], [1], [0, 0, 1, 1], [], []>} : vector<16x16xf32>, vector<16x8xf32>, vector<16x8xf32> -> vector<16x8xf32>
    %40 = tpu.reciprocal %38 : vector<16x1xf32> -> vector<16x1xf32>
    %41 = vector.broadcast %40 : vector<16x1xf32> to vector<16x8xf32>
    %42 = arith.mulf %39, %41 : vector<16x8xf32>
    %43 = vector.extract_strided_slice %9 {offsets = [8, 0], sizes = [8, 32], strides = [1, 1]} : vector<32x32xf32> to vector<8x32xf32>
    %cst_26 = arith.constant dense<0.000000e+00> : vector<16x32xf32>
    %44 = tpu.matmul %42, %43, %cst_26 {dimension_numbers = #tpu.dot_dimension_numbers<[1], [0], [0], [1], [0, 0, 1, 1], [], []>} : vector<16x8xf32>, vector<8x32xf32>, vector<16x32xf32> -> vector<16x32xf32>
    %45 = arith.addf %27, %44 : vector<16x32xf32>
    %46 = vector.extract_strided_slice %2 {offsets = [0, 16], sizes = [16, 8], strides = [1, 1]} : vector<32x32xf32> to vector<16x8xf32>
    %47 = vector.extract_strided_slice %5 {offsets = [0, 16], sizes = [16, 8], strides = [1, 1]} : vector<32x32xf32> to vector<16x8xf32>
    %48 = vector.extract_strided_slice %8 {offsets = [0, 16], sizes = [16, 8], strides = [1, 1]} : vector<32x32xf32> to vector<16x8xf32>
    %cst_27 = arith.constant dense<0.000000e+00> : vector<16x16xf32>
    %49 = tpu.matmul %46, %47, %cst_27 {dimension_numbers = #tpu.dot_dimension_numbers<[1], [1], [0], [0], [0, 0, 1, 0], [], []>} : vector<16x8xf32>, vector<16x8xf32>, vector<16x16xf32> -> vector<16x16xf32>
    %cst_28 = arith.constant dense<0xFF800000> : vector<16xf32>
    %50 = vector.multi_reduction <maximumf>, %49, %cst_28 [1] : vector<16x16xf32> to vector<16xf32>
    %51 = vector.shape_cast %50 : vector<16xf32> to vector<16x1xf32>
    %52 = vector.broadcast %51 : vector<16x1xf32> to vector<16x16xf32>
    %53 = arith.subf %49, %52 : vector<16x16xf32>
    %54 = math.exp %53 : vector<16x16xf32>
    %cst_29 = arith.constant dense<0.000000e+00> : vector<16xf32>
    %55 = vector.multi_reduction <add>, %54, %cst_29 [1] : vector<16x16xf32> to vector<16xf32>
    %56 = vector.shape_cast %55 : vector<16xf32> to vector<16x1xf32>
    %cst_30 = arith.constant dense<0.000000e+00> : vector<16x8xf32>
    %57 = tpu.matmul %54, %48, %cst_30 {dimension_numbers = #tpu.dot_dimension_numbers<[1], [0], [0], [1], [0, 0, 1, 1], [], []>} : vector<16x16xf32>, vector<16x8xf32>, vector<16x8xf32> -> vector<16x8xf32>
    %58 = tpu.reciprocal %56 : vector<16x1xf32> -> vector<16x1xf32>
    %59 = vector.broadcast %58 : vector<16x1xf32> to vector<16x8xf32>
    %60 = arith.mulf %57, %59 : vector<16x8xf32>
    %61 = vector.extract_strided_slice %9 {offsets = [16, 0], sizes = [8, 32], strides = [1, 1]} : vector<32x32xf32> to vector<8x32xf32>
    %cst_31 = arith.constant dense<0.000000e+00> : vector<16x32xf32>
    %62 = tpu.matmul %60, %61, %cst_31 {dimension_numbers = #tpu.dot_dimension_numbers<[1], [0], [0], [1], [0, 0, 1, 1], [], []>} : vector<16x8xf32>, vector<8x32xf32>, vector<16x32xf32> -> vector<16x32xf32>
    %63 = arith.addf %45, %62 : vector<16x32xf32>
    %64 = vector.extract_strided_slice %2 {offsets = [0, 24], sizes = [16, 8], strides = [1, 1]} : vector<32x32xf32> to vector<16x8xf32>
    %65 = vector.extract_strided_slice %5 {offsets = [0, 24], sizes = [16, 8], strides = [1, 1]} : vector<32x32xf32> to vector<16x8xf32>
    %66 = vector.extract_strided_slice %8 {offsets = [0, 24], sizes = [16, 8], strides = [1, 1]} : vector<32x32xf32> to vector<16x8xf32>
    %cst_32 = arith.constant dense<0.000000e+00> : vector<16x16xf32>
    %67 = tpu.matmul %64, %65, %cst_32 {dimension_numbers = #tpu.dot_dimension_numbers<[1], [1], [0], [0], [0, 0, 1, 0], [], []>} : vector<16x8xf32>, vector<16x8xf32>, vector<16x16xf32> -> vector<16x16xf32>
    %cst_33 = arith.constant dense<0xFF800000> : vector<16xf32>
    %68 = vector.multi_reduction <maximumf>, %67, %cst_33 [1] : vector<16x16xf32> to vector<16xf32>
    %69 = vector.shape_cast %68 : vector<16xf32> to vector<16x1xf32>
    %70 = vector.broadcast %69 : vector<16x1xf32> to vector<16x16xf32>
    %71 = arith.subf %67, %70 : vector<16x16xf32>
    %72 = math.exp %71 : vector<16x16xf32>
    %cst_34 = arith.constant dense<0.000000e+00> : vector<16xf32>
    %73 = vector.multi_reduction <add>, %72, %cst_34 [1] : vector<16x16xf32> to vector<16xf32>
    %74 = vector.shape_cast %73 : vector<16xf32> to vector<16x1xf32>
    %cst_35 = arith.constant dense<0.000000e+00> : vector<16x8xf32>
    %75 = tpu.matmul %72, %66, %cst_35 {dimension_numbers = #tpu.dot_dimension_numbers<[1], [0], [0], [1], [0, 0, 1, 1], [], []>} : vector<16x16xf32>, vector<16x8xf32>, vector<16x8xf32> -> vector<16x8xf32>
    %76 = tpu.reciprocal %74 : vector<16x1xf32> -> vector<16x1xf32>
    %77 = vector.broadcast %76 : vector<16x1xf32> to vector<16x8xf32>
    %78 = arith.mulf %75, %77 : vector<16x8xf32>
    %79 = vector.extract_strided_slice %9 {offsets = [24, 0], sizes = [8, 32], strides = [1, 1]} : vector<32x32xf32> to vector<8x32xf32>
    %cst_36 = arith.constant dense<0.000000e+00> : vector<16x32xf32>
    %80 = tpu.matmul %78, %79, %cst_36 {dimension_numbers = #tpu.dot_dimension_numbers<[1], [0], [0], [1], [0, 0, 1, 1], [], []>} : vector<16x8xf32>, vector<8x32xf32>, vector<16x32xf32> -> vector<16x32xf32>
    %81 = arith.addf %63, %80 : vector<16x32xf32>
    %82 = vector.broadcast %10 : vector<1x32xf32> to vector<16x32xf32>
    %83 = arith.addf %81, %82 : vector<16x32xf32>
    %c0_37 = arith.constant 0 : index
    %c0_38 = arith.constant 0 : index
    %84 = vector.load %arg9[%c0_37, %c0_38] : memref<32x32xf32, #tpu.memory_space<vmem>>, vector<16x32xf32>
    tpu.vector_store %arg9[%c0_37, %c0_38], %83 {strides = array<i32>} : memref<32x32xf32, #tpu.memory_space<vmem>>, vector<16x32xf32>,
    %85 = vector.extract_strided_slice %2 {offsets = [16, 0], sizes = [16, 8], strides = [1, 1]} : vector<32x32xf32> to vector<16x8xf32>
    %86 = vector.extract_strided_slice %5 {offsets = [16, 0], sizes = [16, 8], strides = [1, 1]} : vector<32x32xf32> to vector<16x8xf32>
    %87 = vector.extract_strided_slice %8 {offsets = [16, 0], sizes = [16, 8], strides = [1, 1]} : vector<32x32xf32> to vector<16x8xf32>
    %cst_39 = arith.constant dense<0.000000e+00> : vector<16x16xf32>
    %88 = tpu.matmul %85, %86, %cst_39 {dimension_numbers = #tpu.dot_dimension_numbers<[1], [1], [0], [0], [0, 0, 1, 0], [], []>} : vector<16x8xf32>, vector<16x8xf32>, vector<16x16xf32> -> vector<16x16xf32>
    %cst_40 = arith.constant dense<0xFF800000> : vector<16xf32>
    %89 = vector.multi_reduction <maximumf>, %88, %cst_40 [1] : vector<16x16xf32> to vector<16xf32>
    %90 = vector.shape_cast %89 : vector<16xf32> to vector<16x1xf32>
    %91 = vector.broadcast %90 : vector<16x1xf32> to vector<16x16xf32>
    %92 = arith.subf %88, %91 : vector<16x16xf32>
    %93 = math.exp %92 : vector<16x16xf32>
    %cst_41 = arith.constant dense<0.000000e+00> : vector<16xf32>
    %94 = vector.multi_reduction <add>, %93, %cst_41 [1] : vector<16x16xf32> to vector<16xf32>
    %95 = vector.shape_cast %94 : vector<16xf32> to vector<16x1xf32>
    %cst_42 = arith.constant dense<0.000000e+00> : vector<16x8xf32>
    %96 = tpu.matmul %93, %87, %cst_42 {dimension_numbers = #tpu.dot_dimension_numbers<[1], [0], [0], [1], [0, 0, 1, 1], [], []>} : vector<16x16xf32>, vector<16x8xf32>, vector<16x8xf32> -> vector<16x8xf32>
    %97 = tpu.reciprocal %95 : vector<16x1xf32> -> vector<16x1xf32>
    %98 = vector.broadcast %97 : vector<16x1xf32> to vector<16x8xf32>
    %99 = arith.mulf %96, %98 : vector<16x8xf32>
    %100 = vector.extract_strided_slice %9 {offsets = [0, 0], sizes = [8, 32], strides = [1, 1]} : vector<32x32xf32> to vector<8x32xf32>
    %cst_43 = arith.constant dense<0.000000e+00> : vector<16x32xf32>
    %101 = tpu.matmul %99, %100, %cst_43 {dimension_numbers = #tpu.dot_dimension_numbers<[1], [0], [0], [1], [0, 0, 1, 1], [], []>} : vector<16x8xf32>, vector<8x32xf32>, vector<16x32xf32> -> vector<16x32xf32>
    %102 = vector.extract_strided_slice %2 {offsets = [16, 8], sizes = [16, 8], strides = [1, 1]} : vector<32x32xf32> to vector<16x8xf32>
    %103 = vector.extract_strided_slice %5 {offsets = [16, 8], sizes = [16, 8], strides = [1, 1]} : vector<32x32xf32> to vector<16x8xf32>
    %104 = vector.extract_strided_slice %8 {offsets = [16, 8], sizes = [16, 8], strides = [1, 1]} : vector<32x32xf32> to vector<16x8xf32>
    %cst_44 = arith.constant dense<0.000000e+00> : vector<16x16xf32>
    %105 = tpu.matmul %102, %103, %cst_44 {dimension_numbers = #tpu.dot_dimension_numbers<[1], [1], [0], [0], [0, 0, 1, 0], [], []>} : vector<16x8xf32>, vector<16x8xf32>, vector<16x16xf32> -> vector<16x16xf32>
    %cst_45 = arith.constant dense<0xFF800000> : vector<16xf32>
    %106 = vector.multi_reduction <maximumf>, %105, %cst_45 [1] : vector<16x16xf32> to vector<16xf32>
    %107 = vector.shape_cast %106 : vector<16xf32> to vector<16x1xf32>
    %108 = vector.broadcast %107 : vector<16x1xf32> to vector<16x16xf32>
    %109 = arith.subf %105, %108 : vector<16x16xf32>
    %110 = math.exp %109 : vector<16x16xf32>
    %cst_46 = arith.constant dense<0.000000e+00> : vector<16xf32>
    %111 = vector.multi_reduction <add>, %110, %cst_46 [1] : vector<16x16xf32> to vector<16xf32>
    %112 = vector.shape_cast %111 : vector<16xf32> to vector<16x1xf32>
    %cst_47 = arith.constant dense<0.000000e+00> : vector<16x8xf32>
    %113 = tpu.matmul %110, %104, %cst_47 {dimension_numbers = #tpu.dot_dimension_numbers<[1], [0], [0], [1], [0, 0, 1, 1], [], []>} : vector<16x16xf32>, vector<16x8xf32>, vector<16x8xf32> -> vector<16x8xf32>
    %114 = tpu.reciprocal %112 : vector<16x1xf32> -> vector<16x1xf32>
    %115 = vector.broadcast %114 : vector<16x1xf32> to vector<16x8xf32>
    %116 = arith.mulf %113, %115 : vector<16x8xf32>
    %117 = vector.extract_strided_slice %9 {offsets = [8, 0], sizes = [8, 32], strides = [1, 1]} : vector<32x32xf32> to vector<8x32xf32>
    %cst_48 = arith.constant dense<0.000000e+00> : vector<16x32xf32>
    %118 = tpu.matmul %116, %117, %cst_48 {dimension_numbers = #tpu.dot_dimension_numbers<[1], [0], [0], [1], [0, 0, 1, 1], [], []>} : vector<16x8xf32>, vector<8x32xf32>, vector<16x32xf32> -> vector<16x32xf32>
    %119 = arith.addf %101, %118 : vector<16x32xf32>
    %120 = vector.extract_strided_slice %2 {offsets = [16, 16], sizes = [16, 8], strides = [1, 1]} : vector<32x32xf32> to vector<16x8xf32>
    %121 = vector.extract_strided_slice %5 {offsets = [16, 16], sizes = [16, 8], strides = [1, 1]} : vector<32x32xf32> to vector<16x8xf32>
    %122 = vector.extract_strided_slice %8 {offsets = [16, 16], sizes = [16, 8], strides = [1, 1]} : vector<32x32xf32> to vector<16x8xf32>
    %cst_49 = arith.constant dense<0.000000e+00> : vector<16x16xf32>
    %123 = tpu.matmul %120, %121, %cst_49 {dimension_numbers = #tpu.dot_dimension_numbers<[1], [1], [0], [0], [0, 0, 1, 0], [], []>} : vector<16x8xf32>, vector<16x8xf32>, vector<16x16xf32> -> vector<16x16xf32>
    %cst_50 = arith.constant dense<0xFF800000> : vector<16xf32>
    %124 = vector.multi_reduction <maximumf>, %123, %cst_50 [1] : vector<16x16xf32> to vector<16xf32>
    %125 = vector.shape_cast %124 : vector<16xf32> to vector<16x1xf32>
    %126 = vector.broadcast %125 : vector<16x1xf32> to vector<16x16xf32>
    %127 = arith.subf %123, %126 : vector<16x16xf32>
    %128 = math.exp %127 : vector<16x16xf32>
    %cst_51 = arith.constant dense<0.000000e+00> : vector<16xf32>
    %129 = vector.multi_reduction <add>, %128, %cst_51 [1] : vector<16x16xf32> to vector<16xf32>
    %130 = vector.shape_cast %129 : vector<16xf32> to vector<16x1xf32>
    %cst_52 = arith.constant dense<0.000000e+00> : vector<16x8xf32>
    %131 = tpu.matmul %128, %122, %cst_52 {dimension_numbers = #tpu.dot_dimension_numbers<[1], [0], [0], [1], [0, 0, 1, 1], [], []>} : vector<16x16xf32>, vector<16x8xf32>, vector<16x8xf32> -> vector<16x8xf32>
    %132 = tpu.reciprocal %130 : vector<16x1xf32> -> vector<16x1xf32>
    %133 = vector.broadcast %132 : vector<16x1xf32> to vector<16x8xf32>
    %134 = arith.mulf %131, %133 : vector<16x8xf32>
    %135 = vector.extract_strided_slice %9 {offsets = [16, 0], sizes = [8, 32], strides = [1, 1]} : vector<32x32xf32> to vector<8x32xf32>
    %cst_53 = arith.constant dense<0.000000e+00> : vector<16x32xf32>
    %136 = tpu.matmul %134, %135, %cst_53 {dimension_numbers = #tpu.dot_dimension_numbers<[1], [0], [0], [1], [0, 0, 1, 1], [], []>} : vector<16x8xf32>, vector<8x32xf32>, vector<16x32xf32> -> vector<16x32xf32>
    %137 = arith.addf %119, %136 : vector<16x32xf32>
    %138 = vector.extract_strided_slice %2 {offsets = [16, 24], sizes = [16, 8], strides = [1, 1]} : vector<32x32xf32> to vector<16x8xf32>
    %139 = vector.extract_strided_slice %5 {offsets = [16, 24], sizes = [16, 8], strides = [1, 1]} : vector<32x32xf32> to vector<16x8xf32>
    %140 = vector.extract_strided_slice %8 {offsets = [16, 24], sizes = [16, 8], strides = [1, 1]} : vector<32x32xf32> to vector<16x8xf32>
    %cst_54 = arith.constant dense<0.000000e+00> : vector<16x16xf32>
    %141 = tpu.matmul %138, %139, %cst_54 {dimension_numbers = #tpu.dot_dimension_numbers<[1], [1], [0], [0], [0, 0, 1, 0], [], []>} : vector<16x8xf32>, vector<16x8xf32>, vector<16x16xf32> -> vector<16x16xf32>
    %cst_55 = arith.constant dense<0xFF800000> : vector<16xf32>
    %142 = vector.multi_reduction <maximumf>, %141, %cst_55 [1] : vector<16x16xf32> to vector<16xf32>
    %143 = vector.shape_cast %142 : vector<16xf32> to vector<16x1xf32>
    %144 = vector.broadcast %143 : vector<16x1xf32> to vector<16x16xf32>
    %145 = arith.subf %141, %144 : vector<16x16xf32>
    %146 = math.exp %145 : vector<16x16xf32>
    %cst_56 = arith.constant dense<0.000000e+00> : vector<16xf32>
    %147 = vector.multi_reduction <add>, %146, %cst_56 [1] : vector<16x16xf32> to vector<16xf32>
    %148 = vector.shape_cast %147 : vector<16xf32> to vector<16x1xf32>
    %cst_57 = arith.constant dense<0.000000e+00> : vector<16x8xf32>
    %149 = tpu.matmul %146, %140, %cst_57 {dimension_numbers = #tpu.dot_dimension_numbers<[1], [0], [0], [1], [0, 0, 1, 1], [], []>} : vector<16x16xf32>, vector<16x8xf32>, vector<16x8xf32> -> vector<16x8xf32>
    %150 = tpu.reciprocal %148 : vector<16x1xf32> -> vector<16x1xf32>
    %151 = vector.broadcast %150 : vector<16x1xf32> to vector<16x8xf32>
    %152 = arith.mulf %149, %151 : vector<16x8xf32>
    %153 = vector.extract_strided_slice %9 {offsets = [24, 0], sizes = [8, 32], strides = [1, 1]} : vector<32x32xf32> to vector<8x32xf32>
    %cst_58 = arith.constant dense<0.000000e+00> : vector<16x32xf32>
    %154 = tpu.matmul %152, %153, %cst_58 {dimension_numbers = #tpu.dot_dimension_numbers<[1], [0], [0], [1], [0, 0, 1, 1], [], []>} : vector<16x8xf32>, vector<8x32xf32>, vector<16x32xf32> -> vector<16x32xf32>
    %155 = arith.addf %137, %154 : vector<16x32xf32>
    %156 = vector.broadcast %10 : vector<1x32xf32> to vector<16x32xf32>
    %157 = arith.addf %155, %156 : vector<16x32xf32>
    %c16 = arith.constant 16 : index
    %c0_59 = arith.constant 0 : index
    %158 = vector.load %arg9[%c16, %c0_59] : memref<32x32xf32, #tpu.memory_space<vmem>>, vector<16x32xf32>
    tpu.vector_store %arg9[%c16, %c0_59], %157 {strides = array<i32>} : memref<32x32xf32, #tpu.memory_space<vmem>>, vector<16x32xf32>,
    return
  }
  func.func @transform_0(%arg0: i32) -> (i32, i32) {
    %c0_i32 = arith.constant 0 : i32
    %c0_i32_0 = arith.constant 0 : i32
    return %arg0, %c0_i32 : i32, i32
  }
  func.func @transform_1(%arg0: i32) -> (i32, i32) {
    %c0_i32 = arith.constant 0 : i32
    %c0_i32_0 = arith.constant 0 : i32
    return %arg0, %c0_i32 : i32, i32
  }
  func.func @transform_2(%arg0: i32) -> (i32, i32) {
    %c0_i32 = arith.constant 0 : i32
    %c0_i32_0 = arith.constant 0 : i32
    return %arg0, %c0_i32 : i32, i32
  }
  func.func @transform_3(%arg0: i32) -> (i32, i32) {
    %c0_i32 = arith.constant 0 : i32
    %c0_i32_0 = arith.constant 0 : i32
    %c0_i32_1 = arith.constant 0 : i32
    return %c0_i32, %c0_i32_0 : i32, i32
  }
  func.func @transform_4(%arg0: i32) -> (i32, i32) {
    %c0_i32 = arith.constant 0 : i32
    %c0_i32_0 = arith.constant 0 : i32
    %c0_i32_1 = arith.constant 0 : i32
    return %c0_i32, %c0_i32_0 : i32, i32
  }
  func.func @transform_5(%arg0: i32) -> (i32, i32) {
    %c0_i32 = arith.constant 0 : i32
    %c0_i32_0 = arith.constant 0 : i32
    %c0_i32_1 = arith.constant 0 : i32
    return %c0_i32, %c0_i32_0 : i32, i32
  }
  func.func @transform_6(%arg0: i32) -> (i32, i32) {
    %c0_i32 = arith.constant 0 : i32
    %c0_i32_0 = arith.constant 0 : i32
    %c0_i32_1 = arith.constant 0 : i32
    return %c0_i32, %c0_i32_0 : i32, i32
  }
  func.func @transform_7(%arg0: i32) -> (i32, i32) {
    %c0_i32 = arith.constant 0 : i32
    %c0_i32_0 = arith.constant 0 : i32
    %c0_i32_1 = arith.constant 0 : i32
    return %c0_i32, %c0_i32_0 : i32, i32
  }
  func.func @transform_8(%arg0: i32) -> (i32, i32) {
    %c0_i32 = arith.constant 0 : i32
    %c0_i32_0 = arith.constant 0 : i32
    return %arg0, %c0_i32 : i32, i32
  }
}

</mosaic_0001>

<llo_original>
// kernel: tpu_custom_call.1
$region0: #{tpu_custom_call.1}
  #allocation0 [shape = 'u32[]', space=smem, size = 0x4, offset = 0x4, fixed_abs, tag = 'smem constant byte address 0x4 - core index']
  #allocation1 [shape = 'u32[72,128]{1,0:T(1,128)}', space=vmem, size = 0x9000, scoped, tag = 'internal scratch']
  %s0 = inlined_call_operand.hbm [shape: f32[32,32], index: 0, kind: input, shape index: {}]
  %s1 = inlined_call_operand.hbm [shape: f32[32,32], index: 1, kind: input, shape index: {}]
  %s2 = inlined_call_operand.hbm [shape: f32[32,32], index: 2, kind: input, shape index: {}]
  %s3 = inlined_call_operand.hbm [shape: f32[32,32], index: 3, kind: input, shape index: {}]
  %s4 = inlined_call_operand.hbm [shape: f32[32,32], index: 4, kind: input, shape index: {}]
  %s5 = inlined_call_operand.hbm [shape: f32[32,32], index: 5, kind: input, shape index: {}]
  %s6 = inlined_call_operand.hbm [shape: f32[32,32], index: 6, kind: input, shape index: {}]
  %s7 = inlined_call_operand.vmem [shape: f32[1,32], index: 7, kind: input, shape index: {}]
  %s8 = inlined_call_operand.hbm [shape: f32[32,32], index: 8, kind: output, shape index: {}]
  %s9 = sld [smem:[#allocation0]]
  $region70: #{tpu_custom_call.1} parent=0
    _
  %s11 = ssub.s32 1, %s9
  %s12 = scalar_select 0, %s11, %s9
  $region1: #{tpu_custom_call.1} parent=0
    #allocation2 [shape = 'u8[16384]{0}', space=vmem, size = 0x4000, scoped, tag = 'input window, operand 0, single buffered']
    #allocation3 [shape = 's32[1]{0}', space=sflag, size = 0x4, scoped, tag = 'scoped memory for tpu_custom_call.1']
    #allocation4 [shape = 's32[1]{0}', space=sflag, size = 0x4, scoped, tag = 'scoped memory for tpu_custom_call.1']
    #allocation5 [shape = 'u8[16384]{0}', space=vmem, size = 0x4000, scoped, tag = 'input window, operand 1, single buffered']
    #allocation6 [shape = 's32[1]{0}', space=sflag, size = 0x4, scoped, tag = 'scoped memory for tpu_custom_call.1']
    #allocation7 [shape = 'u8[16384]{0}', space=vmem, size = 0x4000, scoped, tag = 'input window, operand 2, single buffered']
    #allocation8 [shape = 'u8[16384]{0}', space=vmem, size = 0x4000, scoped, tag = 'input window, operand 3, single buffered']
    #allocation9 [shape = 's32[1]{0}', space=sflag, size = 0x4, scoped, tag = 'scoped memory for tpu_custom_call.1']
    #allocation10 [shape = 'u8[16384]{0}', space=vmem, size = 0x4000, scoped, tag = 'input window, operand 4, single buffered']
    #allocation11 [shape = 'u8[16384]{0}', space=vmem, size = 0x4000, scoped, tag = 'input window, operand 5, single buffered']
    #allocation12 [shape = 's32[1]{0}', space=sflag, size = 0x4, scoped, tag = 'scoped memory for tpu_custom_call.1']
    #allocation13 [shape = 'u8[16384]{0}', space=vmem, size = 0x4000, scoped, tag = 'input window, operand 6, single buffered']
    #allocation14 [shape = 'u8[16384]{0}', space=vmem, size = 0x4000, scoped, tag = 'output window, operand 0, single buffered']
    %13 = vsyncpa [#allocation3], 0
    %14 = vsyncpa [#allocation6], 0
    %15 = vsyncpa [#allocation9], 0
    %16 = vsyncpa [#allocation12], 0
    %17 = vsyncpa [#allocation4], 0
    // Predicated region
    $region2: #{tpu_custom_call.1} parent=1 // pred_check
      _
    $region3: #{tpu_custom_call.1} parent=1 // pred_check_branch
      %19 = sbr.rel (0) target = $region5
    $region4: #{tpu_custom_call.1} parent=1 // pred_region
      %21 = vsyncadd [#allocation3], 0
      %s22 = sshll.u32 %s0, 4
      %s23 = int_to_ptr.hbm [resolvable:$true] %s22
      %s24 = sshll.u32 [#allocation2], 4
      %s25 = int_to_ptr.vmem [resolvable:$true] %s24
      %30 = dma.hbm_to_vmem [thread:$0]  %s23, 512, %s25, [#allocation3], 128, 128, 8
    $region5: #{tpu_custom_call.1} parent=1 // pred_fallthru
      _
    // Predicated region
    $region6: #{tpu_custom_call.1} parent=1 // pred_check
      _
    $region7: #{tpu_custom_call.1} parent=1 // pred_check_branch
      %32 = sbr.rel (0) target = $region9
    $region8: #{tpu_custom_call.1} parent=1 // pred_region
      %34 = vsyncadd [#allocation6], 0
      %s35 = sshll.u32 %s1, 4
      %s36 = int_to_ptr.hbm [resolvable:$true] %s35
      %s37 = sshll.u32 [#allocation5], 4
      %s38 = int_to_ptr.vmem [resolvable:$true] %s37
      %43 = dma.hbm_to_vmem [thread:$0]  %s36, 512, %s38, [#allocation6], 128, 128, 8
    $region9: #{tpu_custom_call.1} parent=1 // pred_fallthru
      _
    // Predicated region
    $region10: #{tpu_custom_call.1} parent=1 // pred_check
      _
    $region11: #{tpu_custom_call.1} parent=1 // pred_check_branch
      %45 = sbr.rel (0) target = $region13
    $region12: #{tpu_custom_call.1} parent=1 // pred_region
      %47 = vsyncadd [#allocation6], 0
      %s48 = sshll.u32 %s2, 4
      %s49 = int_to_ptr.hbm [resolvable:$true] %s48
      %s50 = sshll.u32 [#allocation7], 4
      %s51 = int_to_ptr.vmem [resolvable:$true] %s50
      %56 = dma.hbm_to_vmem [thread:$0]  %s49, 512, %s51, [#allocation6], 128, 128, 8
    $region13: #{tpu_custom_call.1} parent=1 // pred_fallthru
      _
    // Predicated region
    $region14: #{tpu_custom_call.1} parent=1 // pred_check
      _
    $region15: #{tpu_custom_call.1} parent=1 // pred_check_branch
      %58 = sbr.rel (0) target = $region17
    $region16: #{tpu_custom_call.1} parent=1 // pred_region
      %60 = vsyncadd [#allocation9], 0
      %s61 = sshll.u32 %s3, 4
      %s62 = int_to_ptr.hbm [resolvable:$true] %s61
      %s63 = sshll.u32 [#allocation8], 4
      %s64 = int_to_ptr.vmem [resolvable:$true] %s63
      %69 = dma.hbm_to_vmem [thread:$0]  %s62, 512, %s64, [#allocation9], 128, 128, 8
    $region17: #{tpu_custom_call.1} parent=1 // pred_fallthru
      _
    // Predicated region
    $region18: #{tpu_custom_call.1} parent=1 // pred_check
      _
    $region19: #{tpu_custom_call.1} parent=1 // pred_check_branch
      %71 = sbr.rel (0) target = $region21
    $region20: #{tpu_custom_call.1} parent=1 // pred_region
      %73 = vsyncadd [#allocation9], 0
      %s74 = sshll.u32 %s4, 4
      %s75 = int_to_ptr.hbm [resolvable:$true] %s74
      %s76 = sshll.u32 [#allocation10], 4
      %s77 = int_to_ptr.vmem [resolvable:$true] %s76
      %82 = dma.hbm_to_vmem [thread:$0]  %s75, 512, %s77, [#allocation9], 128, 128, 8
    $region21: #{tpu_custom_call.1} parent=1 // pred_fallthru
      _
    // Predicated region
    $region22: #{tpu_custom_call.1} parent=1 // pred_check
      _
    $region23: #{tpu_custom_call.1} parent=1 // pred_check_branch
      %84 = sbr.rel (0) target = $region25
    $region24: #{tpu_custom_call.1} parent=1 // pred_region
      %86 = vsyncadd [#allocation12], 0
      %s87 = sshll.u32 %s5, 4
      %s88 = int_to_ptr.hbm [resolvable:$true] %s87
      %s89 = sshll.u32 [#allocation11], 4
      %s90 = int_to_ptr.vmem [resolvable:$true] %s89
      %95 = dma.hbm_to_vmem [thread:$0]  %s88, 512, %s90, [#allocation12], 128, 128, 8
    $region25: #{tpu_custom_call.1} parent=1 // pred_fallthru
      _
    // Predicated region
    $region26: #{tpu_custom_call.1} parent=1 // pred_check
      _
    $region27: #{tpu_custom_call.1} parent=1 // pred_check_branch
      %97 = sbr.rel (0) target = $region29
    $region28: #{tpu_custom_call.1} parent=1 // pred_region
      %99 = vsyncadd [#allocation12], 0
      %s100 = sshll.u32 %s6, 4
      %s101 = int_to_ptr.hbm [resolvable:$true] %s100
      %s102 = sshll.u32 [#allocation13], 4
      %s103 = int_to_ptr.vmem [resolvable:$true] %s102
      %108 = dma.hbm_to_vmem [thread:$0]  %s101, 512, %s103, [#allocation12], 128, 128, 8
    $region29: #{tpu_custom_call.1} parent=1 // pred_fallthru
      _
    // Predicated region
    $region30: #{tpu_custom_call.1} parent=1 // pred_check
      _
    $region31: #{tpu_custom_call.1} parent=1 // pred_check_branch
      %110 = sbr.rel (0) target = $region33
    $region32: #{tpu_custom_call.1} parent=1 // pred_region
      _
    $region33: #{tpu_custom_call.1} parent=1 // pred_fallthru
      _
    // Predicated region
    $region34: #{tpu_custom_call.1} parent=1 // pred_check
      _
    $region35: #{tpu_custom_call.1} parent=1 // pred_check_branch
      %112 = sbr.rel (0) target = $region37
    $region36: #{tpu_custom_call.1} parent=1 // pred_region
      %114 = dma.done [#allocation3], 512
    $region37: #{tpu_custom_call.1} parent=1 // pred_fallthru
      _
    // Predicated region
    $region38: #{tpu_custom_call.1} parent=1 // pred_check
      _
    $region39: #{tpu_custom_call.1} parent=1 // pred_check_branch
      %116 = sbr.rel (0) target = $region41
    $region40: #{tpu_custom_call.1} parent=1 // pred_region
      %118 = dma.done [#allocation6], 512
    $region41: #{tpu_custom_call.1} parent=1 // pred_fallthru
      _
    // Predicated region
    $region42: #{tpu_custom_call.1} parent=1 // pred_check
      _
    $region43: #{tpu_custom_call.1} parent=1 // pred_check_branch
      %120 = sbr.rel (0) target = $region45
    $region44: #{tpu_custom_call.1} parent=1 // pred_region
      %122 = dma.done [#allocation6], 512
    $region45: #{tpu_custom_call.1} parent=1 // pred_fallthru
      _
    // Predicated region
    $region46: #{tpu_custom_call.1} parent=1 // pred_check
      _
    $region47: #{tpu_custom_call.1} parent=1 // pred_check_branch
      %124 = sbr.rel (0) target = $region49
    $region48: #{tpu_custom_call.1} parent=1 // pred_region
      %126 = dma.done [#allocation9], 512
    $region49: #{tpu_custom_call.1} parent=1 // pred_fallthru
      _
    // Predicated region
    $region50: #{tpu_custom_call.1} parent=1 // pred_check
      _
    $region51: #{tpu_custom_call.1} parent=1 // pred_check_branch
      %128 = sbr.rel (0) target = $region53
    $region52: #{tpu_custom_call.1} parent=1 // pred_region
      %130 = dma.done [#allocation9], 512
    $region53: #{tpu_custom_call.1} parent=1 // pred_fallthru
      _
    // Predicated region
    $region54: #{tpu_custom_call.1} parent=1 // pred_check
      _
    $region55: #{tpu_custom_call.1} parent=1 // pred_check_branch
      %132 = sbr.rel (0) target = $region57
    $region56: #{tpu_custom_call.1} parent=1 // pred_region
      %134 = dma.done [#allocation12], 512
    $region57: #{tpu_custom_call.1} parent=1 // pred_fallthru
      _
    // Predicated region
    $region58: #{tpu_custom_call.1} parent=1 // pred_check
      _
    $region59: #{tpu_custom_call.1} parent=1 // pred_check_branch
      %136 = sbr.rel (0) target = $region61
    $region60: #{tpu_custom_call.1} parent=1 // pred_region
      %138 = dma.done [#allocation12], 512
    $region61: #{tpu_custom_call.1} parent=1 // pred_fallthru
      _
    %v139 = vld [vmem:[#allocation2] sm:$0xff]
    %v140 = vld [vmem:[#allocation2 + $0x8] sm:$0xff]
    %v141 = vld [vmem:[#allocation2 + $0x10] sm:$0xff]
    %v142 = vld [vmem:[#allocation2 + $0x18] sm:$0xff]
    %v143 = vld [vmem:[#allocation8] sm:$0xff]
    %v144 = vld [vmem:[#allocation8 + $0x8] sm:$0xff]
    %v145 = vld [vmem:[#allocation8 + $0x10] sm:$0xff]
    %v146 = vld [vmem:[#allocation8 + $0x18] sm:$0xff]
    %vm147 = vcmask 261120
    %v149 = vsel %vm147, %v139, 0
    %v152 = vsel %vm147, %v140, 0
    %v155 = vsel %vm147, %v141, 0
    %v158 = vsel %vm147, %v142, 0
    %160 = vmatpush.msra.mxu0 0.0
    %161 = vmatpush.msra.mxu0 0.0
    %162 = vmatpush.msra.mxu0 0.0
    %163 = vmatpush.msra.mxu0 0.0
    %164 = vmatpush.msra.mxu0 0.0
    %165 = vmatpush.msra.mxu0 0.0
    %166 = vmatpush.msra.mxu0 0.0
    %167 = vmatpush.msra.mxu0 0.0
    %168 = vmatpush.msra.mxu0 0.0
    %169 = vmatpush.msra.mxu0 0.0
    %170 = vmatpush.msra.mxu0 0.0
    %171 = vmatpush.msra.mxu0 0.0
    %172 = vmatpush.msra.mxu0 %v146
    %173 = vmatpush.msra.mxu0 %v145
    %174 = vmatpush.msra.mxu0 %v144
    %175 = vmatpush.msra.mxu0 %v143
    %176 = vmatmul.f32.gmra.mxu0 %v149
    %v177 = vpop.f32.mrf.mxu0
    %v178 = vadd.f32 0.0, %v177
    %179 = vmatmul.f32.gmra.mxu0 %v152
    %v180 = vpop.f32.mrf.mxu0
    %v181 = vadd.f32 0.0, %v180
    %182 = vmatmul.f32.gmra.mxu0 %v155
    %v183 = vpop.f32.mrf.mxu0
    %v184 = vadd.f32 0.0, %v183
    %185 = vmatmul.f32.gmra.mxu0 %v158
    %v186 = vpop.f32.mrf.mxu0
    %v187 = vadd.f32 0.0, %v186
    %188 = vdwg.mxu0
    %v189 = vld [vmem:[#allocation5] sm:$0xff]
    %v190 = vld [vmem:[#allocation5 + $0x8] sm:$0xff]
    %v191 = vld [vmem:[#allocation5 + $0x10] sm:$0xff]
    %v192 = vld [vmem:[#allocation5 + $0x18] sm:$0xff]
    %v193 = vld [vmem:[#allocation10] sm:$0xff]
    %v194 = vld [vmem:[#allocation10 + $0x8] sm:$0xff]
    %v195 = vld [vmem:[#allocation10 + $0x10] sm:$0xff]
    %v196 = vld [vmem:[#allocation10 + $0x18] sm:$0xff]
    %v198 = vsel %vm147, %v189, 0
    %v201 = vsel %vm147, %v190, 0
    %v204 = vsel %vm147, %v191, 0
    %v207 = vsel %vm147, %v192, 0
    %209 = vmatpush.msra.mxu0 0.0
    %210 = vmatpush.msra.mxu0 0.0
    %211 = vmatpush.msra.mxu0 0.0
    %212 = vmatpush.msra.mxu0 0.0
    %213 = vmatpush.msra.mxu0 0.0
    %214 = vmatpush.msra.mxu0 0.0
    %215 = vmatpush.msra.mxu0 0.0
    %216 = vmatpush.msra.mxu0 0.0
    %217 = vmatpush.msra.mxu0 0.0
    %218 = vmatpush.msra.mxu0 0.0
    %219 = vmatpush.msra.mxu0 0.0
    %220 = vmatpush.msra.mxu0 0.0
    %221 = vmatpush.msra.mxu0 %v196
    %222 = vmatpush.msra.mxu0 %v195
    %223 = vmatpush.msra.mxu0 %v194
    %224 = vmatpush.msra.mxu0 %v193
    %225 = vmatmul.f32.gmra.mxu0 %v198
    %v226 = vpop.f32.mrf.mxu0
    %v227 = vadd.f32 0.0, %v226
    %228 = vmatmul.f32.gmra.mxu0 %v201
    %v229 = vpop.f32.mrf.mxu0
    %v230 = vadd.f32 0.0, %v229
    %231 = vmatmul.f32.gmra.mxu0 %v204
    %v232 = vpop.f32.mrf.mxu0
    %v233 = vadd.f32 0.0, %v232
    %234 = vmatmul.f32.gmra.mxu0 %v207
    %v235 = vpop.f32.mrf.mxu0
    %v236 = vadd.f32 0.0, %v235
    %237 = vdwg.mxu0
    %v238 = vld [vmem:[#allocation7] sm:$0xff]
    %v239 = vld [vmem:[#allocation7 + $0x8] sm:$0xff]
    %v240 = vld [vmem:[#allocation7 + $0x10] sm:$0xff]
    %v241 = vld [vmem:[#allocation7 + $0x18] sm:$0xff]
    %v242 = vld [vmem:[#allocation11] sm:$0xff]
    %v243 = vld [vmem:[#allocation11 + $0x8] sm:$0xff]
    %v244 = vld [vmem:[#allocation11 + $0x10] sm:$0xff]
    %v245 = vld [vmem:[#allocation11 + $0x18] sm:$0xff]
    %v247 = vsel %vm147, %v238, 0
    %v250 = vsel %vm147, %v239, 0
    %v253 = vsel %vm147, %v240, 0
    %v256 = vsel %vm147, %v241, 0
    %258 = vmatpush.msra.mxu0 0.0
    %259 = vmatpush.msra.mxu0 0.0
    %260 = vmatpush.msra.mxu0 0.0
    %261 = vmatpush.msra.mxu0 0.0
    %262 = vmatpush.msra.mxu0 0.0
    %263 = vmatpush.msra.mxu0 0.0
    %264 = vmatpush.msra.mxu0 0.0
    %265 = vmatpush.msra.mxu0 0.0
    %266 = vmatpush.msra.mxu0 0.0
    %267 = vmatpush.msra.mxu0 0.0
    %268 = vmatpush.msra.mxu0 0.0
    %269 = vmatpush.msra.mxu0 0.0
    %270 = vmatpush.msra.mxu0 %v245
    %271 = vmatpush.msra.mxu0 %v244
    %272 = vmatpush.msra.mxu0 %v243
    %273 = vmatpush.msra.mxu0 %v242
    %274 = vmatmul.f32.gmra.mxu0 %v247
    %v275 = vpop.f32.mrf.mxu0
    %v276 = vadd.f32 0.0, %v275
    %277 = vmatmul.f32.gmra.mxu0 %v250
    %v278 = vpop.f32.mrf.mxu0
    %v279 = vadd.f32 0.0, %v278
    %280 = vmatmul.f32.gmra.mxu0 %v253
    %v281 = vpop.f32.mrf.mxu0
    %v282 = vadd.f32 0.0, %v281
    %283 = vmatmul.f32.gmra.mxu0 %v256
    %v284 = vpop.f32.mrf.mxu0
    %v285 = vadd.f32 0.0, %v284
    %286 = vdwg.mxu0
    %v287 = vld [vmem:[#allocation13] sm:$0xff]
    %v288 = vld [vmem:[#allocation13 + $0x8] sm:$0xff]
    %v289 = vld [vmem:[#allocation13 + $0x10] sm:$0xff]
    %v290 = vld [vmem:[#allocation13 + $0x18] sm:$0xff]
    %v291 = vld [vmem:[%s7] sm:$0x1]
    %vm292 = vcmask 64512
    %v294 = vsel %vm292, %v178, 0
    %v297 = vsel %vm292, %v181, 0
    %v300 = vsel %vm292, %v227, 0
    %v303 = vsel %vm292, %v230, 0
    %305 = vmatpush.xpose.msra.mxu0 0.0
    %306 = vmatpush.xpose.msra.mxu0 0.0
    %307 = vmatpush.xpose.msra.mxu0 0.0
    %308 = vmatpush.xpose.msra.mxu0 0.0
    %309 = vmatpush.xpose.msra.mxu0 0.0
    %310 = vmatpush.xpose.msra.mxu0 0.0
    %311 = vmatpush.xpose.msra.mxu0 0.0
    %312 = vmatpush.xpose.msra.mxu0 0.0
    %313 = vmatpush.xpose.msra.mxu0 0.0
    %314 = vmatpush.xpose.msra.mxu0 0.0
    %315 = vmatpush.xpose.msra.mxu0 0.0
    %316 = vmatpush.xpose.msra.mxu0 0.0
    %317 = vmatpush.xpose.msra.mxu0 0.0
    %318 = vmatpush.xpose.msra.mxu0 0.0
    %319 = vmatpush.xpose.msra.mxu0 %v303
    %320 = vmatpush.xpose.msra.mxu0 %v300
    %321 = vmatmul.f32.gmra.mxu0 %v294
    %v322 = vpop.f32.mrf.mxu0
    %v323 = vadd.f32 0.0, %v322
    %324 = vmatmul.f32.gmra.mxu0 %v297
    %v325 = vpop.f32.mrf.mxu0
    %v326 = vadd.f32 0.0, %v325
    %327 = vdwg.mxu0
    %vm328 = vcmask 130048
    %v329 = vsel %vm328, %v323, -inf
    %330 = vmax.xlane.f32.xlu0 %v329
    %v331 = vpop.xlane.xlu0 %330
    %v332 = vsel %vm328, %v326, -inf
    %333 = vmax.xlane.f32.xlu0 %v332
    %v334 = vpop.xlane.xlu0 %333
    %v335 = vsub.f32 %v323, %v331
    %v336 = vsub.f32 %v326, %v334
    %v337 = vmul.f32 %v335, 1.442695
    %v338 = vpow.pop %v337
    %v339 = vmul.f32 %v336, 1.442695
    %v340 = vpow.pop %v339
    %v341 = vsel %vm328, %v338, 0.0
    %342 = vadd.xlane.f32.xlu0 %v341
    %v343 = vpop.xlane.xlu0 %342
    %v344 = vsel %vm328, %v340, 0.0
    %345 = vadd.xlane.f32.xlu0 %v344
    %v346 = vpop.xlane.xlu0 %345
    %v348 = vsel %vm328, %v338, 0
    %v351 = vsel %vm328, %v340, 0
    %353 = vmatpush.msra.mxu0 0.0
    %354 = vmatpush.msra.mxu0 0.0
    %355 = vmatpush.msra.mxu0 0.0
    %356 = vmatpush.msra.mxu0 0.0
    %357 = vmatpush.msra.mxu0 0.0
    %358 = vmatpush.msra.mxu0 0.0
    %359 = vmatpush.msra.mxu0 0.0
    %360 = vmatpush.msra.mxu0 0.0
    %361 = vmatpush.msra.mxu0 0.0
    %362 = vmatpush.msra.mxu0 0.0
    %363 = vmatpush.msra.mxu0 0.0
    %364 = vmatpush.msra.mxu0 0.0
    %365 = vmatpush.msra.mxu0 0.0
    %366 = vmatpush.msra.mxu0 0.0
    %367 = vmatpush.msra.mxu0 %v279
    %368 = vmatpush.msra.mxu0 %v276
    %369 = vmatmul.f32.gmra.mxu0 %v348
    %v370 = vpop.f32.mrf.mxu0
    %v371 = vadd.f32 0.0, %v370
    %372 = vmatmul.f32.gmra.mxu0 %v351
    %v373 = vpop.f32.mrf.mxu0
    %v374 = vadd.f32 0.0, %v373
    %375 = vdwg.mxu0
    %v376 = vrcp.pop %v343
    %v377 = vmul.f32 %v343, %v376
    %v378 = vsub.f32 1.0, %v377
    %v379 = vmul.f32 %v376, %v378
    %v380 = vadd.f32 %v376, %v379
    %vm381 = vweird.f32 %v343
    %vm382 = vweird.f32 %v376
    %vm383 = vmor %vm381, %vm382
    %v384 = vsel %vm383, %v376, %v380
    %v385 = vand.u32 2147483647, %v343
    %vm386 = vcmp.eq.f32.partialorder %v385, 8.507059e+37
    %v387 = vand.u32 %v343, 2147483648
    %v388 = vor.u32 1.1754944e-38, %v387
    %v389 = vsel %vm386, %v388, %v384
    %v390 = vrcp.pop %v346
    %v391 = vmul.f32 %v346, %v390
    %v392 = vsub.f32 1.0, %v391
    %v393 = vmul.f32 %v390, %v392
    %v394 = vadd.f32 %v390, %v393
    %vm395 = vweird.f32 %v346
    %vm396 = vweird.f32 %v390
    %vm397 = vmor %vm395, %vm396
    %v398 = vsel %vm397, %v390, %v394
    %v399 = vand.u32 2147483647, %v346
    %vm400 = vcmp.eq.f32.partialorder %v399, 8.507059e+37
    %v401 = vand.u32 %v346, 2147483648
    %v402 = vor.u32 1.1754944e-38, %v401
    %v403 = vsel %vm400, %v402, %v398
    %v404 = vmul.f32 %v371, %v389
    %v405 = vmul.f32 %v374, %v403
    %406 = vrot.lane.b32.xlu0 %v178, 120
    %v407 = vpop.permute.xlu0 %406
    %408 = vrot.lane.b32.xlu0 %v181, 120
    %v409 = vpop.permute.xlu0 %408
    %410 = vrot.lane.b32.xlu0 %v227, 120
    %v411 = vpop.permute.xlu0 %410
    %412 = vrot.lane.b32.xlu0 %v230, 120
    %v413 = vpop.permute.xlu0 %412
    %v414 = vsel %vm292, %v407, 0
    %v416 = vsel %vm292, %v409, 0
    %v418 = vsel %vm292, %v411, 0
    %v420 = vsel %vm292, %v413, 0
    %422 = vmatpush.xpose.msra.mxu0 0.0
    %423 = vmatpush.xpose.msra.mxu0 0.0
    %424 = vmatpush.xpose.msra.mxu0 0.0
    %425 = vmatpush.xpose.msra.mxu0 0.0
    %426 = vmatpush.xpose.msra.mxu0 0.0
    %427 = vmatpush.xpose.msra.mxu0 0.0
    %428 = vmatpush.xpose.msra.mxu0 0.0
    %429 = vmatpush.xpose.msra.mxu0 0.0
    %430 = vmatpush.xpose.msra.mxu0 0.0
    %431 = vmatpush.xpose.msra.mxu0 0.0
    %432 = vmatpush.xpose.msra.mxu0 0.0
    %433 = vmatpush.xpose.msra.mxu0 0.0
    %434 = vmatpush.xpose.msra.mxu0 0.0
    %435 = vmatpush.xpose.msra.mxu0 0.0
    %436 = vmatpush.xpose.msra.mxu0 %v420
    %437 = vmatpush.xpose.msra.mxu0 %v418
    %438 = vmatmul.f32.gmra.mxu0 %v414
    %v439 = vpop.f32.mrf.mxu0
    %v440 = vadd.f32 0.0, %v439
    %441 = vmatmul.f32.gmra.mxu0 %v416
    %v442 = vpop.f32.mrf.mxu0
    %v443 = vadd.f32 0.0, %v442
    %444 = vdwg.mxu0
    %v445 = vsel %vm328, %v440, -inf
    %446 = vmax.xlane.f32.xlu0 %v445
    %v447 = vpop.xlane.xlu0 %446
    %v448 = vsel %vm328, %v443, -inf
    %449 = vmax.xlane.f32.xlu0 %v448
    %v450 = vpop.xlane.xlu0 %449
    %v451 = vsub.f32 %v440, %v447
    %v452 = vsub.f32 %v443, %v450
    %v453 = vmul.f32 %v451, 1.442695
    %v454 = vpow.pop %v453
    %v455 = vmul.f32 %v452, 1.442695
    %v456 = vpow.pop %v455
    %v457 = vsel %vm328, %v454, 0.0
    %458 = vadd.xlane.f32.xlu0 %v457
    %v459 = vpop.xlane.xlu0 %458
    %v460 = vsel %vm328, %v456, 0.0
    %461 = vadd.xlane.f32.xlu0 %v460
    %v462 = vpop.xlane.xlu0 %461
    %465 = vrot.lane.b32.xlu0 %v276, 120
    %v466 = vpop.permute.xlu0 %465
    %467 = vrot.lane.b32.xlu0 %v279, 120
    %v468 = vpop.permute.xlu0 %467
    %v472 = vsel %vm328, %v454, 0
    %v475 = vsel %vm328, %v456, 0
    %477 = vmatpush.msra.mxu0 0.0
    %478 = vmatpush.msra.mxu0 0.0
    %479 = vmatpush.msra.mxu0 0.0
    %480 = vmatpush.msra.mxu0 0.0
    %481 = vmatpush.msra.mxu0 0.0
    %482 = vmatpush.msra.mxu0 0.0
    %483 = vmatpush.msra.mxu0 0.0
    %484 = vmatpush.msra.mxu0 0.0
    %485 = vmatpush.msra.mxu0 0.0
    %486 = vmatpush.msra.mxu0 0.0
    %487 = vmatpush.msra.mxu0 0.0
    %488 = vmatpush.msra.mxu0 0.0
    %489 = vmatpush.msra.mxu0 0.0
    %490 = vmatpush.msra.mxu0 0.0
    %491 = vmatpush.msra.mxu0 %v468
    %492 = vmatpush.msra.mxu0 %v466
    %493 = vmatmul.f32.gmra.mxu0 %v472
    %v494 = vpop.f32.mrf.mxu0
    %v495 = vadd.f32 0.0, %v494
    %496 = vmatmul.f32.gmra.mxu0 %v475
    %v497 = vpop.f32.mrf.mxu0
    %v498 = vadd.f32 0.0, %v497
    %499 = vdwg.mxu0
    %v500 = vrcp.pop %v459
    %v501 = vmul.f32 %v459, %v500
    %v502 = vsub.f32 1.0, %v501
    %v503 = vmul.f32 %v500, %v502
    %v504 = vadd.f32 %v500, %v503
    %vm505 = vweird.f32 %v459
    %vm506 = vweird.f32 %v500
    %vm507 = vmor %vm505, %vm506
    %v508 = vsel %vm507, %v500, %v504
    %v509 = vand.u32 2147483647, %v459
    %vm510 = vcmp.eq.f32.partialorder %v509, 8.507059e+37
    %v511 = vand.u32 %v459, 2147483648
    %v512 = vor.u32 1.1754944e-38, %v511
    %v513 = vsel %vm510, %v512, %v508
    %v514 = vrcp.pop %v462
    %v515 = vmul.f32 %v462, %v514
    %v516 = vsub.f32 1.0, %v515
    %v517 = vmul.f32 %v514, %v516
    %v518 = vadd.f32 %v514, %v517
    %vm519 = vweird.f32 %v462
    %vm520 = vweird.f32 %v514
    %vm521 = vmor %vm519, %vm520
    %v522 = vsel %vm521, %v514, %v518
    %v523 = vand.u32 2147483647, %v462
    %vm524 = vcmp.eq.f32.partialorder %v523, 8.507059e+37
    %v525 = vand.u32 %v462, 2147483648
    %v526 = vor.u32 1.1754944e-38, %v525
    %v527 = vsel %vm524, %v526, %v522
    %v528 = vmul.f32 %v495, %v513
    %v529 = vmul.f32 %v498, %v527
    %v531 = vsel %vm292, %v528, 0
    %v534 = vsel %vm292, %v529, 0
    %536 = vmatpush.msra.mxu0 0.0
    %537 = vmatpush.msra.mxu0 0.0
    %538 = vmatpush.msra.mxu0 0.0
    %539 = vmatpush.msra.mxu0 0.0
    %540 = vmatpush.msra.mxu0 0.0
    %541 = vmatpush.msra.mxu0 0.0
    %542 = vmatpush.msra.mxu0 0.0
    %543 = vmatpush.msra.mxu0 0.0
    %544 = vmatpush.msra.mxu0 0.0
    %545 = vmatpush.msra.mxu0 0.0
    %546 = vmatpush.msra.mxu0 0.0
    %547 = vmatpush.msra.mxu0 0.0
    %548 = vmatpush.msra.mxu0 0.0
    %549 = vmatpush.msra.mxu0 0.0
    %550 = vmatpush.msra.mxu0 0.0
    %551 = vmatpush.msra.mxu0 %v288
    %552 = vmatmul.f32.gmra.mxu0 %v531
    %v553 = vpop.f32.mrf.mxu0
    %v554 = vadd.f32 0.0, %v553
    %555 = vmatmul.f32.gmra.mxu0 %v534
    %v556 = vpop.f32.mrf.mxu0
    %v557 = vadd.f32 0.0, %v556
    %558 = vdwg.mxu0
    %v560 = vsel %vm292, %v404, 0
    %v563 = vsel %vm292, %v405, 0
    %565 = vmatpush.msra.mxu0 0.0
    %566 = vmatpush.msra.mxu0 0.0
    %567 = vmatpush.msra.mxu0 0.0
    %568 = vmatpush.msra.mxu0 0.0
    %569 = vmatpush.msra.mxu0 0.0
    %570 = vmatpush.msra.mxu0 0.0
    %571 = vmatpush.msra.mxu0 0.0
    %572 = vmatpush.msra.mxu0 0.0
    %573 = vmatpush.msra.mxu0 0.0
    %574 = vmatpush.msra.mxu0 0.0
    %575 = vmatpush.msra.mxu0 0.0
    %576 = vmatpush.msra.mxu0 0.0
    %577 = vmatpush.msra.mxu0 0.0
    %578 = vmatpush.msra.mxu0 0.0
    %579 = vmatpush.msra.mxu0 0.0
    %580 = vmatpush.msra.mxu0 %v287
    %581 = vmatmul.f32.gmra.mxu0 %v560
    %v582 = vpop.f32.mrf.mxu0
    %v583 = vadd.f32 %v554, %v582
    %584 = vmatmul.f32.gmra.mxu0 %v563
    %v585 = vpop.f32.mrf.mxu0
    %v586 = vadd.f32 %v557, %v585
    %587 = vdwg.mxu0
    %588 = vrot.lane.b32.xlu0 %v178, 112
    %v589 = vpop.permute.xlu0 %588
    %590 = vrot.lane.b32.xlu0 %v181, 112
    %v591 = vpop.permute.xlu0 %590
    %592 = vrot.lane.b32.xlu0 %v227, 112
    %v593 = vpop.permute.xlu0 %592
    %594 = vrot.lane.b32.xlu0 %v230, 112
    %v595 = vpop.permute.xlu0 %594
    %v596 = vsel %vm292, %v589, 0
    %v598 = vsel %vm292, %v591, 0
    %v600 = vsel %vm292, %v593, 0
    %v602 = vsel %vm292, %v595, 0
    %604 = vmatpush.xpose.msra.mxu0 0.0
    %605 = vmatpush.xpose.msra.mxu0 0.0
    %606 = vmatpush.xpose.msra.mxu0 0.0
    %607 = vmatpush.xpose.msra.mxu0 0.0
    %608 = vmatpush.xpose.msra.mxu0 0.0
    %609 = vmatpush.xpose.msra.mxu0 0.0
    %610 = vmatpush.xpose.msra.mxu0 0.0
    %611 = vmatpush.xpose.msra.mxu0 0.0
    %612 = vmatpush.xpose.msra.mxu0 0.0
    %613 = vmatpush.xpose.msra.mxu0 0.0
    %614 = vmatpush.xpose.msra.mxu0 0.0
    %615 = vmatpush.xpose.msra.mxu0 0.0
    %616 = vmatpush.xpose.msra.mxu0 0.0
    %617 = vmatpush.xpose.msra.mxu0 0.0
    %618 = vmatpush.xpose.msra.mxu0 %v602
    %619 = vmatpush.xpose.msra.mxu0 %v600
    %620 = vmatmul.f32.gmra.mxu0 %v596
    %v621 = vpop.f32.mrf.mxu0
    %v622 = vadd.f32 0.0, %v621
    %623 = vmatmul.f32.gmra.mxu0 %v598
    %v624 = vpop.f32.mrf.mxu0
    %v625 = vadd.f32 0.0, %v624
    %626 = vdwg.mxu0
    %v627 = vsel %vm328, %v622, -inf
    %628 = vmax.xlane.f32.xlu0 %v627
    %v629 = vpop.xlane.xlu0 %628
    %v630 = vsel %vm328, %v625, -inf
    %631 = vmax.xlane.f32.xlu0 %v630
    %v632 = vpop.xlane.xlu0 %631
    %v633 = vsub.f32 %v622, %v629
    %v634 = vsub.f32 %v625, %v632
    %v635 = vmul.f32 %v633, 1.442695
    %v636 = vpow.pop %v635
    %v637 = vmul.f32 %v634, 1.442695
    %v638 = vpow.pop %v637
    %v639 = vsel %vm328, %v636, 0.0
    %640 = vadd.xlane.f32.xlu0 %v639
    %v641 = vpop.xlane.xlu0 %640
    %v642 = vsel %vm328, %v638, 0.0
    %643 = vadd.xlane.f32.xlu0 %v642
    %v644 = vpop.xlane.xlu0 %643
    %645 = vrot.lane.b32.xlu0 %v276, 112
    %v646 = vpop.permute.xlu0 %645
    %647 = vrot.lane.b32.xlu0 %v279, 112
    %v648 = vpop.permute.xlu0 %647
    %v652 = vsel %vm328, %v636, 0
    %v655 = vsel %vm328, %v638, 0
    %657 = vmatpush.msra.mxu0 0.0
    %658 = vmatpush.msra.mxu0 0.0
    %659 = vmatpush.msra.mxu0 0.0
    %660 = vmatpush.msra.mxu0 0.0
    %661 = vmatpush.msra.mxu0 0.0
    %662 = vmatpush.msra.mxu0 0.0
    %663 = vmatpush.msra.mxu0 0.0
    %664 = vmatpush.msra.mxu0 0.0
    %665 = vmatpush.msra.mxu0 0.0
    %666 = vmatpush.msra.mxu0 0.0
    %667 = vmatpush.msra.mxu0 0.0
    %668 = vmatpush.msra.mxu0 0.0
    %669 = vmatpush.msra.mxu0 0.0
    %670 = vmatpush.msra.mxu0 0.0
    %671 = vmatpush.msra.mxu0 %v648
    %672 = vmatpush.msra.mxu0 %v646
    %673 = vmatmul.f32.gmra.mxu0 %v652
    %v674 = vpop.f32.mrf.mxu0
    %v675 = vadd.f32 0.0, %v674
    %676 = vmatmul.f32.gmra.mxu0 %v655
    %v677 = vpop.f32.mrf.mxu0
    %v678 = vadd.f32 0.0, %v677
    %679 = vdwg.mxu0
    %v680 = vrcp.pop %v641
    %v681 = vmul.f32 %v641, %v680
    %v682 = vsub.f32 1.0, %v681
    %v683 = vmul.f32 %v680, %v682
    %v684 = vadd.f32 %v680, %v683
    %vm685 = vweird.f32 %v641
    %vm686 = vweird.f32 %v680
    %vm687 = vmor %vm685, %vm686
    %v688 = vsel %vm687, %v680, %v684
    %v689 = vand.u32 2147483647, %v641
    %vm690 = vcmp.eq.f32.partialorder %v689, 8.507059e+37
    %v691 = vand.u32 %v641, 2147483648
    %v692 = vor.u32 1.1754944e-38, %v691
    %v693 = vsel %vm690, %v692, %v688
    %v694 = vrcp.pop %v644
    %v695 = vmul.f32 %v644, %v694
    %v696 = vsub.f32 1.0, %v695
    %v697 = vmul.f32 %v694, %v696
    %v698 = vadd.f32 %v694, %v697
    %vm699 = vweird.f32 %v644
    %vm700 = vweird.f32 %v694
    %vm701 = vmor %vm699, %vm700
    %v702 = vsel %vm701, %v694, %v698
    %v703 = vand.u32 2147483647, %v644
    %vm704 = vcmp.eq.f32.partialorder %v703, 8.507059e+37
    %v705 = vand.u32 %v644, 2147483648
    %v706 = vor.u32 1.1754944e-38, %v705
    %v707 = vsel %vm704, %v706, %v702
    %v708 = vmul.f32 %v675, %v693
    %v709 = vmul.f32 %v678, %v707
    %v711 = vsel %vm292, %v708, 0
    %v714 = vsel %vm292, %v709, 0
    %716 = vmatpush.msra.mxu0 0.0
    %717 = vmatpush.msra.mxu0 0.0
    %718 = vmatpush.msra.mxu0 0.0
    %719 = vmatpush.msra.mxu0 0.0
    %720 = vmatpush.msra.mxu0 0.0
    %721 = vmatpush.msra.mxu0 0.0
    %722 = vmatpush.msra.mxu0 0.0
    %723 = vmatpush.msra.mxu0 0.0
    %724 = vmatpush.msra.mxu0 0.0
    %725 = vmatpush.msra.mxu0 0.0
    %726 = vmatpush.msra.mxu0 0.0
    %727 = vmatpush.msra.mxu0 0.0
    %728 = vmatpush.msra.mxu0 0.0
    %729 = vmatpush.msra.mxu0 0.0
    %730 = vmatpush.msra.mxu0 0.0
    %731 = vmatpush.msra.mxu0 %v289
    %732 = vmatmul.f32.gmra.mxu0 %v711
    %v733 = vpop.f32.mrf.mxu0
    %v734 = vadd.f32 0.0, %v733
    %735 = vmatmul.f32.gmra.mxu0 %v714
    %v736 = vpop.f32.mrf.mxu0
    %v737 = vadd.f32 0.0, %v736
    %738 = vdwg.mxu0
    %v739 = vadd.f32 %v583, %v734
    %v740 = vadd.f32 %v586, %v737
    %741 = vrot.lane.b32.xlu0 %v178, 104
    %v742 = vpop.permute.xlu0 %741
    %743 = vrot.lane.b32.xlu0 %v181, 104
    %v744 = vpop.permute.xlu0 %743
    %745 = vrot.lane.b32.xlu0 %v227, 104
    %v746 = vpop.permute.xlu0 %745
    %747 = vrot.lane.b32.xlu0 %v230, 104
    %v748 = vpop.permute.xlu0 %747
    %v749 = vsel %vm292, %v742, 0
    %v751 = vsel %vm292, %v744, 0
    %v753 = vsel %vm292, %v746, 0
    %v755 = vsel %vm292, %v748, 0
    %757 = vmatpush.xpose.msra.mxu0 0.0
    %758 = vmatpush.xpose.msra.mxu0 0.0
    %759 = vmatpush.xpose.msra.mxu0 0.0
    %760 = vmatpush.xpose.msra.mxu0 0.0
    %761 = vmatpush.xpose.msra.mxu0 0.0
    %762 = vmatpush.xpose.msra.mxu0 0.0
    %763 = vmatpush.xpose.msra.mxu0 0.0
    %764 = vmatpush.xpose.msra.mxu0 0.0
    %765 = vmatpush.xpose.msra.mxu0 0.0
    %766 = vmatpush.xpose.msra.mxu0 0.0
    %767 = vmatpush.xpose.msra.mxu0 0.0
    %768 = vmatpush.xpose.msra.mxu0 0.0
    %769 = vmatpush.xpose.msra.mxu0 0.0
    %770 = vmatpush.xpose.msra.mxu0 0.0
    %771 = vmatpush.xpose.msra.mxu0 %v755
    %772 = vmatpush.xpose.msra.mxu0 %v753
    %773 = vmatmul.f32.gmra.mxu0 %v749
    %v774 = vpop.f32.mrf.mxu0
    %v775 = vadd.f32 0.0, %v774
    %776 = vmatmul.f32.gmra.mxu0 %v751
    %v777 = vpop.f32.mrf.mxu0
    %v778 = vadd.f32 0.0, %v777
    %779 = vdwg.mxu0
    %v780 = vsel %vm328, %v775, -inf
    %781 = vmax.xlane.f32.xlu0 %v780
    %v782 = vpop.xlane.xlu0 %781
    %v783 = vsel %vm328, %v778, -inf
    %784 = vmax.xlane.f32.xlu0 %v783
    %v785 = vpop.xlane.xlu0 %784
    %v786 = vsub.f32 %v775, %v782
    %v787 = vsub.f32 %v778, %v785
    %v788 = vmul.f32 %v786, 1.442695
    %v789 = vpow.pop %v788
    %v790 = vmul.f32 %v787, 1.442695
    %v791 = vpow.pop %v790
    %v792 = vsel %vm328, %v789, 0.0
    %793 = vadd.xlane.f32.xlu0 %v792
    %v794 = vpop.xlane.xlu0 %793
    %v795 = vsel %vm328, %v791, 0.0
    %796 = vadd.xlane.f32.xlu0 %v795
    %v797 = vpop.xlane.xlu0 %796
    %798 = vrot.lane.b32.xlu0 %v276, 104
    %v799 = vpop.permute.xlu0 %798
    %800 = vrot.lane.b32.xlu0 %v279, 104
    %v801 = vpop.permute.xlu0 %800
    %v805 = vsel %vm328, %v789, 0
    %v808 = vsel %vm328, %v791, 0
    %810 = vmatpush.msra.mxu0 0.0
    %811 = vmatpush.msra.mxu0 0.0
    %812 = vmatpush.msra.mxu0 0.0
    %813 = vmatpush.msra.mxu0 0.0
    %814 = vmatpush.msra.mxu0 0.0
    %815 = vmatpush.msra.mxu0 0.0
    %816 = vmatpush.msra.mxu0 0.0
    %817 = vmatpush.msra.mxu0 0.0
    %818 = vmatpush.msra.mxu0 0.0
    %819 = vmatpush.msra.mxu0 0.0
    %820 = vmatpush.msra.mxu0 0.0
    %821 = vmatpush.msra.mxu0 0.0
    %822 = vmatpush.msra.mxu0 0.0
    %823 = vmatpush.msra.mxu0 0.0
    %824 = vmatpush.msra.mxu0 %v801
    %825 = vmatpush.msra.mxu0 %v799
    %826 = vmatmul.f32.gmra.mxu0 %v805
    %v827 = vpop.f32.mrf.mxu0
    %v828 = vadd.f32 0.0, %v827
    %829 = vmatmul.f32.gmra.mxu0 %v808
    %v830 = vpop.f32.mrf.mxu0
    %v831 = vadd.f32 0.0, %v830
    %832 = vdwg.mxu0
    %v833 = vrcp.pop %v794
    %v834 = vmul.f32 %v794, %v833
    %v835 = vsub.f32 1.0, %v834
    %v836 = vmul.f32 %v833, %v835
    %v837 = vadd.f32 %v833, %v836
    %vm838 = vweird.f32 %v794
    %vm839 = vweird.f32 %v833
    %vm840 = vmor %vm838, %vm839
    %v841 = vsel %vm840, %v833, %v837
    %v842 = vand.u32 2147483647, %v794
    %vm843 = vcmp.eq.f32.partialorder %v842, 8.507059e+37
    %v844 = vand.u32 %v794, 2147483648
    %v845 = vor.u32 1.1754944e-38, %v844
    %v846 = vsel %vm843, %v845, %v841
    %v847 = vrcp.pop %v797
    %v848 = vmul.f32 %v797, %v847
    %v849 = vsub.f32 1.0, %v848
    %v850 = vmul.f32 %v847, %v849
    %v851 = vadd.f32 %v847, %v850
    %vm852 = vweird.f32 %v797
    %vm853 = vweird.f32 %v847
    %vm854 = vmor %vm852, %vm853
    %v855 = vsel %vm854, %v847, %v851
    %v856 = vand.u32 2147483647, %v797
    %vm857 = vcmp.eq.f32.partialorder %v856, 8.507059e+37
    %v858 = vand.u32 %v797, 2147483648
    %v859 = vor.u32 1.1754944e-38, %v858
    %v860 = vsel %vm857, %v859, %v855
    %v861 = vmul.f32 %v828, %v846
    %v862 = vmul.f32 %v831, %v860
    %v864 = vsel %vm292, %v861, 0
    %v867 = vsel %vm292, %v862, 0
    %869 = vmatpush.msra.mxu0 0.0
    %870 = vmatpush.msra.mxu0 0.0
    %871 = vmatpush.msra.mxu0 0.0
    %872 = vmatpush.msra.mxu0 0.0
    %873 = vmatpush.msra.mxu0 0.0
    %874 = vmatpush.msra.mxu0 0.0
    %875 = vmatpush.msra.mxu0 0.0
    %876 = vmatpush.msra.mxu0 0.0
    %877 = vmatpush.msra.mxu0 0.0
    %878 = vmatpush.msra.mxu0 0.0
    %879 = vmatpush.msra.mxu0 0.0
    %880 = vmatpush.msra.mxu0 0.0
    %881 = vmatpush.msra.mxu0 0.0
    %882 = vmatpush.msra.mxu0 0.0
    %883 = vmatpush.msra.mxu0 0.0
    %884 = vmatpush.msra.mxu0 %v290
    %885 = vmatmul.f32.gmra.mxu0 %v864
    %v886 = vpop.f32.mrf.mxu0
    %v887 = vadd.f32 0.0, %v886
    %888 = vmatmul.f32.gmra.mxu0 %v867
    %v889 = vpop.f32.mrf.mxu0
    %v890 = vadd.f32 0.0, %v889
    %891 = vdwg.mxu0
    %v892 = vadd.f32 %v739, %v887
    %v893 = vadd.f32 %v740, %v890
    %v895 = vperm.slane %v291, 0
    %v897 = vadd.f32 %v892, %v895
    %v898 = vadd.f32 %v893, %v895
    %899 = vst.msk [vmem:[#allocation14] sm:$0xff] %vm147, %v897
    %900 = vst.msk [vmem:[#allocation14 + $0x8] sm:$0xff] %vm147, %v898
    %v902 = vsel %vm292, %v184, 0
    %v905 = vsel %vm292, %v187, 0
    %v908 = vsel %vm292, %v233, 0
    %v911 = vsel %vm292, %v236, 0
    %913 = vmatpush.xpose.msra.mxu0 0.0
    %914 = vmatpush.xpose.msra.mxu0 0.0
    %915 = vmatpush.xpose.msra.mxu0 0.0
    %916 = vmatpush.xpose.msra.mxu0 0.0
    %917 = vmatpush.xpose.msra.mxu0 0.0
    %918 = vmatpush.xpose.msra.mxu0 0.0
    %919 = vmatpush.xpose.msra.mxu0 0.0
    %920 = vmatpush.xpose.msra.mxu0 0.0
    %921 = vmatpush.xpose.msra.mxu0 0.0
    %922 = vmatpush.xpose.msra.mxu0 0.0
    %923 = vmatpush.xpose.msra.mxu0 0.0
    %924 = vmatpush.xpose.msra.mxu0 0.0
    %925 = vmatpush.xpose.msra.mxu0 0.0
    %926 = vmatpush.xpose.msra.mxu0 0.0
    %927 = vmatpush.xpose.msra.mxu0 %v911
    %928 = vmatpush.xpose.msra.mxu0 %v908
    %929 = vmatmul.f32.gmra.mxu0 %v902
    %v930 = vpop.f32.mrf.mxu0
    %v931 = vadd.f32 0.0, %v930
    %932 = vmatmul.f32.gmra.mxu0 %v905
    %v933 = vpop.f32.mrf.mxu0
    %v934 = vadd.f32 0.0, %v933
    %935 = vdwg.mxu0
    %v936 = vsel %vm328, %v931, -inf
    %937 = vmax.xlane.f32.xlu0 %v936
    %v938 = vpop.xlane.xlu0 %937
    %v939 = vsel %vm328, %v934, -inf
    %940 = vmax.xlane.f32.xlu0 %v939
    %v941 = vpop.xlane.xlu0 %940
    %v942 = vsub.f32 %v931, %v938
    %v943 = vsub.f32 %v934, %v941
    %v944 = vmul.f32 %v942, 1.442695
    %v945 = vpow.pop %v944
    %v946 = vmul.f32 %v943, 1.442695
    %v947 = vpow.pop %v946
    %v948 = vsel %vm328, %v945, 0.0
    %949 = vadd.xlane.f32.xlu0 %v948
    %v950 = vpop.xlane.xlu0 %949
    %v951 = vsel %vm328, %v947, 0.0
    %952 = vadd.xlane.f32.xlu0 %v951
    %v953 = vpop.xlane.xlu0 %952
    %v955 = vsel %vm328, %v945, 0
    %v958 = vsel %vm328, %v947, 0
    %960 = vmatpush.msra.mxu0 0.0
    %961 = vmatpush.msra.mxu0 0.0
    %962 = vmatpush.msra.mxu0 0.0
    %963 = vmatpush.msra.mxu0 0.0
    %964 = vmatpush.msra.mxu0 0.0
    %965 = vmatpush.msra.mxu0 0.0
    %966 = vmatpush.msra.mxu0 0.0
    %967 = vmatpush.msra.mxu0 0.0
    %968 = vmatpush.msra.mxu0 0.0
    %969 = vmatpush.msra.mxu0 0.0
    %970 = vmatpush.msra.mxu0 0.0
    %971 = vmatpush.msra.mxu0 0.0
    %972 = vmatpush.msra.mxu0 0.0
    %973 = vmatpush.msra.mxu0 0.0
    %974 = vmatpush.msra.mxu0 %v285
    %975 = vmatpush.msra.mxu0 %v282
    %976 = vmatmul.f32.gmra.mxu0 %v955
    %v977 = vpop.f32.mrf.mxu0
    %v978 = vadd.f32 0.0, %v977
    %979 = vmatmul.f32.gmra.mxu0 %v958
    %v980 = vpop.f32.mrf.mxu0
    %v981 = vadd.f32 0.0, %v980
    %982 = vdwg.mxu0
    %v983 = vrcp.pop %v950
    %v984 = vmul.f32 %v950, %v983
    %v985 = vsub.f32 1.0, %v984
    %v986 = vmul.f32 %v983, %v985
    %v987 = vadd.f32 %v983, %v986
    %vm988 = vweird.f32 %v950
    %vm989 = vweird.f32 %v983
    %vm990 = vmor %vm988, %vm989
    %v991 = vsel %vm990, %v983, %v987
    %v992 = vand.u32 2147483647, %v950
    %vm993 = vcmp.eq.f32.partialorder %v992, 8.507059e+37
    %v994 = vand.u32 %v950, 2147483648
    %v995 = vor.u32 1.1754944e-38, %v994
    %v996 = vsel %vm993, %v995, %v991
    %v997 = vrcp.pop %v953
    %v998 = vmul.f32 %v953, %v997
    %v999 = vsub.f32 1.0, %v998
    %v1000 = vmul.f32 %v997, %v999
    %v1001 = vadd.f32 %v997, %v1000
    %vm1002 = vweird.f32 %v953
    %vm1003 = vweird.f32 %v997
    %vm1004 = vmor %vm1002, %vm1003
    %v1005 = vsel %vm1004, %v997, %v1001
    %v1006 = vand.u32 2147483647, %v953
    %vm1007 = vcmp.eq.f32.partialorder %v1006, 8.507059e+37
    %v1008 = vand.u32 %v953, 2147483648
    %v1009 = vor.u32 1.1754944e-38, %v1008
    %v1010 = vsel %vm1007, %v1009, %v1005
    %v1011 = vmul.f32 %v978, %v996
    %v1012 = vmul.f32 %v981, %v1010
    %1013 = vrot.lane.b32.xlu0 %v184, 120
    %v1014 = vpop.permute.xlu0 %1013
    %1015 = vrot.lane.b32.xlu0 %v187, 120
    %v1016 = vpop.permute.xlu0 %1015
    %1017 = vrot.lane.b32.xlu0 %v233, 120
    %v1018 = vpop.permute.xlu0 %1017
    %1019 = vrot.lane.b32.xlu0 %v236, 120
    %v1020 = vpop.permute.xlu0 %1019
    %v1021 = vsel %vm292, %v1014, 0
    %v1023 = vsel %vm292, %v1016, 0
    %v1025 = vsel %vm292, %v1018, 0
    %v1027 = vsel %vm292, %v1020, 0
    %1029 = vmatpush.xpose.msra.mxu0 0.0
    %1030 = vmatpush.xpose.msra.mxu0 0.0
    %1031 = vmatpush.xpose.msra.mxu0 0.0
    %1032 = vmatpush.xpose.msra.mxu0 0.0
    %1033 = vmatpush.xpose.msra.mxu0 0.0
    %1034 = vmatpush.xpose.msra.mxu0 0.0
    %1035 = vmatpush.xpose.msra.mxu0 0.0
    %1036 = vmatpush.xpose.msra.mxu0 0.0
    %1037 = vmatpush.xpose.msra.mxu0 0.0
    %1038 = vmatpush.xpose.msra.mxu0 0.0
    %1039 = vmatpush.xpose.msra.mxu0 0.0
    %1040 = vmatpush.xpose.msra.mxu0 0.0
    %1041 = vmatpush.xpose.msra.mxu0 0.0
    %1042 = vmatpush.xpose.msra.mxu0 0.0
    %1043 = vmatpush.xpose.msra.mxu0 %v1027
    %1044 = vmatpush.xpose.msra.mxu0 %v1025
    %1045 = vmatmul.f32.gmra.mxu0 %v1021
    %v1046 = vpop.f32.mrf.mxu0
    %v1047 = vadd.f32 0.0, %v1046
    %1048 = vmatmul.f32.gmra.mxu0 %v1023
    %v1049 = vpop.f32.mrf.mxu0
    %v1050 = vadd.f32 0.0, %v1049
    %1051 = vdwg.mxu0
    %v1052 = vsel %vm328, %v1047, -inf
    %1053 = vmax.xlane.f32.xlu0 %v1052
    %v1054 = vpop.xlane.xlu0 %1053
    %v1055 = vsel %vm328, %v1050, -inf
    %1056 = vmax.xlane.f32.xlu0 %v1055
    %v1057 = vpop.xlane.xlu0 %1056
    %v1058 = vsub.f32 %v1047, %v1054
    %v1059 = vsub.f32 %v1050, %v1057
    %v1060 = vmul.f32 %v1058, 1.442695
    %v1061 = vpow.pop %v1060
    %v1062 = vmul.f32 %v1059, 1.442695
    %v1063 = vpow.pop %v1062
    %v1064 = vsel %vm328, %v1061, 0.0
    %1065 = vadd.xlane.f32.xlu0 %v1064
    %v1066 = vpop.xlane.xlu0 %1065
    %v1067 = vsel %vm328, %v1063, 0.0
    %1068 = vadd.xlane.f32.xlu0 %v1067
    %v1069 = vpop.xlane.xlu0 %1068
    %1072 = vrot.lane.b32.xlu0 %v282, 120
    %v1073 = vpop.permute.xlu0 %1072
    %1074 = vrot.lane.b32.xlu0 %v285, 120
    %v1075 = vpop.permute.xlu0 %1074
    %v1079 = vsel %vm328, %v1061, 0
    %v1082 = vsel %vm328, %v1063, 0
    %1084 = vmatpush.msra.mxu0 0.0
    %1085 = vmatpush.msra.mxu0 0.0
    %1086 = vmatpush.msra.mxu0 0.0
    %1087 = vmatpush.msra.mxu0 0.0
    %1088 = vmatpush.msra.mxu0 0.0
    %1089 = vmatpush.msra.mxu0 0.0
    %1090 = vmatpush.msra.mxu0 0.0
    %1091 = vmatpush.msra.mxu0 0.0
    %1092 = vmatpush.msra.mxu0 0.0
    %1093 = vmatpush.msra.mxu0 0.0
    %1094 = vmatpush.msra.mxu0 0.0
    %1095 = vmatpush.msra.mxu0 0.0
    %1096 = vmatpush.msra.mxu0 0.0
    %1097 = vmatpush.msra.mxu0 0.0
    %1098 = vmatpush.msra.mxu0 %v1075
    %1099 = vmatpush.msra.mxu0 %v1073
    %1100 = vmatmul.f32.gmra.mxu0 %v1079
    %v1101 = vpop.f32.mrf.mxu0
    %v1102 = vadd.f32 0.0, %v1101
    %1103 = vmatmul.f32.gmra.mxu0 %v1082
    %v1104 = vpop.f32.mrf.mxu0
    %v1105 = vadd.f32 0.0, %v1104
    %1106 = vdwg.mxu0
    %v1107 = vrcp.pop %v1066
    %v1108 = vmul.f32 %v1066, %v1107
    %v1109 = vsub.f32 1.0, %v1108
    %v1110 = vmul.f32 %v1107, %v1109
    %v1111 = vadd.f32 %v1107, %v1110
    %vm1112 = vweird.f32 %v1066
    %vm1113 = vweird.f32 %v1107
    %vm1114 = vmor %vm1112, %vm1113
    %v1115 = vsel %vm1114, %v1107, %v1111
    %v1116 = vand.u32 2147483647, %v1066
    %vm1117 = vcmp.eq.f32.partialorder %v1116, 8.507059e+37
    %v1118 = vand.u32 %v1066, 2147483648
    %v1119 = vor.u32 1.1754944e-38, %v1118
    %v1120 = vsel %vm1117, %v1119, %v1115
    %v1121 = vrcp.pop %v1069
    %v1122 = vmul.f32 %v1069, %v1121
    %v1123 = vsub.f32 1.0, %v1122
    %v1124 = vmul.f32 %v1121, %v1123
    %v1125 = vadd.f32 %v1121, %v1124
    %vm1126 = vweird.f32 %v1069
    %vm1127 = vweird.f32 %v1121
    %vm1128 = vmor %vm1126, %vm1127
    %v1129 = vsel %vm1128, %v1121, %v1125
    %v1130 = vand.u32 2147483647, %v1069
    %vm1131 = vcmp.eq.f32.partialorder %v1130, 8.507059e+37
    %v1132 = vand.u32 %v1069, 2147483648
    %v1133 = vor.u32 1.1754944e-38, %v1132
    %v1134 = vsel %vm1131, %v1133, %v1129
    %v1135 = vmul.f32 %v1102, %v1120
    %v1136 = vmul.f32 %v1105, %v1134
    %v1138 = vsel %vm292, %v1135, 0
    %v1141 = vsel %vm292, %v1136, 0
    %1143 = vmatpush.msra.mxu0 0.0
    %1144 = vmatpush.msra.mxu0 0.0
    %1145 = vmatpush.msra.mxu0 0.0
    %1146 = vmatpush.msra.mxu0 0.0
    %1147 = vmatpush.msra.mxu0 0.0
    %1148 = vmatpush.msra.mxu0 0.0
    %1149 = vmatpush.msra.mxu0 0.0
    %1150 = vmatpush.msra.mxu0 0.0
    %1151 = vmatpush.msra.mxu0 0.0
    %1152 = vmatpush.msra.mxu0 0.0
    %1153 = vmatpush.msra.mxu0 0.0
    %1154 = vmatpush.msra.mxu0 0.0
    %1155 = vmatpush.msra.mxu0 0.0
    %1156 = vmatpush.msra.mxu0 0.0
    %1157 = vmatpush.msra.mxu0 0.0
    %1158 = vmatpush.msra.mxu0 %v288
    %1159 = vmatmul.f32.gmra.mxu0 %v1138
    %v1160 = vpop.f32.mrf.mxu0
    %v1161 = vadd.f32 0.0, %v1160
    %1162 = vmatmul.f32.gmra.mxu0 %v1141
    %v1163 = vpop.f32.mrf.mxu0
    %v1164 = vadd.f32 0.0, %v1163
    %1165 = vdwg.mxu0
    %v1167 = vsel %vm292, %v1011, 0
    %v1170 = vsel %vm292, %v1012, 0
    %1172 = vmatpush.msra.mxu0 0.0
    %1173 = vmatpush.msra.mxu0 0.0
    %1174 = vmatpush.msra.mxu0 0.0
    %1175 = vmatpush.msra.mxu0 0.0
    %1176 = vmatpush.msra.mxu0 0.0
    %1177 = vmatpush.msra.mxu0 0.0
    %1178 = vmatpush.msra.mxu0 0.0
    %1179 = vmatpush.msra.mxu0 0.0
    %1180 = vmatpush.msra.mxu0 0.0
    %1181 = vmatpush.msra.mxu0 0.0
    %1182 = vmatpush.msra.mxu0 0.0
    %1183 = vmatpush.msra.mxu0 0.0
    %1184 = vmatpush.msra.mxu0 0.0
    %1185 = vmatpush.msra.mxu0 0.0
    %1186 = vmatpush.msra.mxu0 0.0
    %1187 = vmatpush.msra.mxu0 %v287
    %1188 = vmatmul.f32.gmra.mxu0 %v1167
    %v1189 = vpop.f32.mrf.mxu0
    %v1190 = vadd.f32 %v1161, %v1189
    %1191 = vmatmul.f32.gmra.mxu0 %v1170
    %v1192 = vpop.f32.mrf.mxu0
    %v1193 = vadd.f32 %v1164, %v1192
    %1194 = vdwg.mxu0
    %1195 = vrot.lane.b32.xlu0 %v184, 112
    %v1196 = vpop.permute.xlu0 %1195
    %1197 = vrot.lane.b32.xlu0 %v187, 112
    %v1198 = vpop.permute.xlu0 %1197
    %1199 = vrot.lane.b32.xlu0 %v233, 112
    %v1200 = vpop.permute.xlu0 %1199
    %1201 = vrot.lane.b32.xlu0 %v236, 112
    %v1202 = vpop.permute.xlu0 %1201
    %v1203 = vsel %vm292, %v1196, 0
    %v1205 = vsel %vm292, %v1198, 0
    %v1207 = vsel %vm292, %v1200, 0
    %v1209 = vsel %vm292, %v1202, 0
    %1211 = vmatpush.xpose.msra.mxu0 0.0
    %1212 = vmatpush.xpose.msra.mxu0 0.0
    %1213 = vmatpush.xpose.msra.mxu0 0.0
    %1214 = vmatpush.xpose.msra.mxu0 0.0
    %1215 = vmatpush.xpose.msra.mxu0 0.0
    %1216 = vmatpush.xpose.msra.mxu0 0.0
    %1217 = vmatpush.xpose.msra.mxu0 0.0
    %1218 = vmatpush.xpose.msra.mxu0 0.0
    %1219 = vmatpush.xpose.msra.mxu0 0.0
    %1220 = vmatpush.xpose.msra.mxu0 0.0
    %1221 = vmatpush.xpose.msra.mxu0 0.0
    %1222 = vmatpush.xpose.msra.mxu0 0.0
    %1223 = vmatpush.xpose.msra.mxu0 0.0
    %1224 = vmatpush.xpose.msra.mxu0 0.0
    %1225 = vmatpush.xpose.msra.mxu0 %v1209
    %1226 = vmatpush.xpose.msra.mxu0 %v1207
    %1227 = vmatmul.f32.gmra.mxu0 %v1203
    %v1228 = vpop.f32.mrf.mxu0
    %v1229 = vadd.f32 0.0, %v1228
    %1230 = vmatmul.f32.gmra.mxu0 %v1205
    %v1231 = vpop.f32.mrf.mxu0
    %v1232 = vadd.f32 0.0, %v1231
    %1233 = vdwg.mxu0
    %v1234 = vsel %vm328, %v1229, -inf
    %1235 = vmax.xlane.f32.xlu0 %v1234
    %v1236 = vpop.xlane.xlu0 %1235
    %v1237 = vsel %vm328, %v1232, -inf
    %1238 = vmax.xlane.f32.xlu0 %v1237
    %v1239 = vpop.xlane.xlu0 %1238
    %v1240 = vsub.f32 %v1229, %v1236
    %v1241 = vsub.f32 %v1232, %v1239
    %v1242 = vmul.f32 %v1240, 1.442695
    %v1243 = vpow.pop %v1242
    %v1244 = vmul.f32 %v1241, 1.442695
    %v1245 = vpow.pop %v1244
    %v1246 = vsel %vm328, %v1243, 0.0
    %1247 = vadd.xlane.f32.xlu0 %v1246
    %v1248 = vpop.xlane.xlu0 %1247
    %v1249 = vsel %vm328, %v1245, 0.0
    %1250 = vadd.xlane.f32.xlu0 %v1249
    %v1251 = vpop.xlane.xlu0 %1250
    %1252 = vrot.lane.b32.xlu0 %v282, 112
    %v1253 = vpop.permute.xlu0 %1252
    %1254 = vrot.lane.b32.xlu0 %v285, 112
    %v1255 = vpop.permute.xlu0 %1254
    %v1259 = vsel %vm328, %v1243, 0
    %v1262 = vsel %vm328, %v1245, 0
    %1264 = vmatpush.msra.mxu0 0.0
    %1265 = vmatpush.msra.mxu0 0.0
    %1266 = vmatpush.msra.mxu0 0.0
    %1267 = vmatpush.msra.mxu0 0.0
    %1268 = vmatpush.msra.mxu0 0.0
    %1269 = vmatpush.msra.mxu0 0.0
    %1270 = vmatpush.msra.mxu0 0.0
    %1271 = vmatpush.msra.mxu0 0.0
    %1272 = vmatpush.msra.mxu0 0.0
    %1273 = vmatpush.msra.mxu0 0.0
    %1274 = vmatpush.msra.mxu0 0.0
    %1275 = vmatpush.msra.mxu0 0.0
    %1276 = vmatpush.msra.mxu0 0.0
    %1277 = vmatpush.msra.mxu0 0.0
    %1278 = vmatpush.msra.mxu0 %v1255
    %1279 = vmatpush.msra.mxu0 %v1253
    %1280 = vmatmul.f32.gmra.mxu0 %v1259
    %v1281 = vpop.f32.mrf.mxu0
    %v1282 = vadd.f32 0.0, %v1281
    %1283 = vmatmul.f32.gmra.mxu0 %v1262
    %v1284 = vpop.f32.mrf.mxu0
    %v1285 = vadd.f32 0.0, %v1284
    %1286 = vdwg.mxu0
    %v1287 = vrcp.pop %v1248
    %v1288 = vmul.f32 %v1248, %v1287
    %v1289 = vsub.f32 1.0, %v1288
    %v1290 = vmul.f32 %v1287, %v1289
    %v1291 = vadd.f32 %v1287, %v1290
    %vm1292 = vweird.f32 %v1248
    %vm1293 = vweird.f32 %v1287
    %vm1294 = vmor %vm1292, %vm1293
    %v1295 = vsel %vm1294, %v1287, %v1291
    %v1296 = vand.u32 2147483647, %v1248
    %vm1297 = vcmp.eq.f32.partialorder %v1296, 8.507059e+37
    %v1298 = vand.u32 %v1248, 2147483648
    %v1299 = vor.u32 1.1754944e-38, %v1298
    %v1300 = vsel %vm1297, %v1299, %v1295
    %v1301 = vrcp.pop %v1251
    %v1302 = vmul.f32 %v1251, %v1301
    %v1303 = vsub.f32 1.0, %v1302
    %v1304 = vmul.f32 %v1301, %v1303
    %v1305 = vadd.f32 %v1301, %v1304
    %vm1306 = vweird.f32 %v1251
    %vm1307 = vweird.f32 %v1301
    %vm1308 = vmor %vm1306, %vm1307
    %v1309 = vsel %vm1308, %v1301, %v1305
    %v1310 = vand.u32 2147483647, %v1251
    %vm1311 = vcmp.eq.f32.partialorder %v1310, 8.507059e+37
    %v1312 = vand.u32 %v1251, 2147483648
    %v1313 = vor.u32 1.1754944e-38, %v1312
    %v1314 = vsel %vm1311, %v1313, %v1309
    %v1315 = vmul.f32 %v1282, %v1300
    %v1316 = vmul.f32 %v1285, %v1314
    %v1318 = vsel %vm292, %v1315, 0
    %v1321 = vsel %vm292, %v1316, 0
    %1323 = vmatpush.msra.mxu0 0.0
    %1324 = vmatpush.msra.mxu0 0.0
    %1325 = vmatpush.msra.mxu0 0.0
    %1326 = vmatpush.msra.mxu0 0.0
    %1327 = vmatpush.msra.mxu0 0.0
    %1328 = vmatpush.msra.mxu0 0.0
    %1329 = vmatpush.msra.mxu0 0.0
    %1330 = vmatpush.msra.mxu0 0.0
    %1331 = vmatpush.msra.mxu0 0.0
    %1332 = vmatpush.msra.mxu0 0.0
    %1333 = vmatpush.msra.mxu0 0.0
    %1334 = vmatpush.msra.mxu0 0.0
    %1335 = vmatpush.msra.mxu0 0.0
    %1336 = vmatpush.msra.mxu0 0.0
    %1337 = vmatpush.msra.mxu0 0.0
    %1338 = vmatpush.msra.mxu0 %v289
    %1339 = vmatmul.f32.gmra.mxu0 %v1318
    %v1340 = vpop.f32.mrf.mxu0
    %v1341 = vadd.f32 0.0, %v1340
    %1342 = vmatmul.f32.gmra.mxu0 %v1321
    %v1343 = vpop.f32.mrf.mxu0
    %v1344 = vadd.f32 0.0, %v1343
    %1345 = vdwg.mxu0
    %v1346 = vadd.f32 %v1190, %v1341
    %v1347 = vadd.f32 %v1193, %v1344
    %1348 = vrot.lane.b32.xlu0 %v184, 104
    %v1349 = vpop.permute.xlu0 %1348
    %1350 = vrot.lane.b32.xlu0 %v187, 104
    %v1351 = vpop.permute.xlu0 %1350
    %1352 = vrot.lane.b32.xlu0 %v233, 104
    %v1353 = vpop.permute.xlu0 %1352
    %1354 = vrot.lane.b32.xlu0 %v236, 104
    %v1355 = vpop.permute.xlu0 %1354
    %v1356 = vsel %vm292, %v1349, 0
    %v1358 = vsel %vm292, %v1351, 0
    %v1360 = vsel %vm292, %v1353, 0
    %v1362 = vsel %vm292, %v1355, 0
    %1364 = vmatpush.xpose.msra.mxu0 0.0
    %1365 = vmatpush.xpose.msra.mxu0 0.0
    %1366 = vmatpush.xpose.msra.mxu0 0.0
    %1367 = vmatpush.xpose.msra.mxu0 0.0
    %1368 = vmatpush.xpose.msra.mxu0 0.0
    %1369 = vmatpush.xpose.msra.mxu0 0.0
    %1370 = vmatpush.xpose.msra.mxu0 0.0
    %1371 = vmatpush.xpose.msra.mxu0 0.0
    %1372 = vmatpush.xpose.msra.mxu0 0.0
    %1373 = vmatpush.xpose.msra.mxu0 0.0
    %1374 = vmatpush.xpose.msra.mxu0 0.0
    %1375 = vmatpush.xpose.msra.mxu0 0.0
    %1376 = vmatpush.xpose.msra.mxu0 0.0
    %1377 = vmatpush.xpose.msra.mxu0 0.0
    %1378 = vmatpush.xpose.msra.mxu0 %v1362
    %1379 = vmatpush.xpose.msra.mxu0 %v1360
    %1380 = vmatmul.f32.gmra.mxu0 %v1356
    %v1381 = vpop.f32.mrf.mxu0
    %v1382 = vadd.f32 0.0, %v1381
    %1383 = vmatmul.f32.gmra.mxu0 %v1358
    %v1384 = vpop.f32.mrf.mxu0
    %v1385 = vadd.f32 0.0, %v1384
    %1386 = vdwg.mxu0
    %v1387 = vsel %vm328, %v1382, -inf
    %1388 = vmax.xlane.f32.xlu0 %v1387
    %v1389 = vpop.xlane.xlu0 %1388
    %v1390 = vsel %vm328, %v1385, -inf
    %1391 = vmax.xlane.f32.xlu0 %v1390
    %v1392 = vpop.xlane.xlu0 %1391
    %v1393 = vsub.f32 %v1382, %v1389
    %v1394 = vsub.f32 %v1385, %v1392
    %v1395 = vmul.f32 %v1393, 1.442695
    %v1396 = vpow.pop %v1395
    %v1397 = vmul.f32 %v1394, 1.442695
    %v1398 = vpow.pop %v1397
    %v1399 = vsel %vm328, %v1396, 0.0
    %1400 = vadd.xlane.f32.xlu0 %v1399
    %v1401 = vpop.xlane.xlu0 %1400
    %v1402 = vsel %vm328, %v1398, 0.0
    %1403 = vadd.xlane.f32.xlu0 %v1402
    %v1404 = vpop.xlane.xlu0 %1403
    %1405 = vrot.lane.b32.xlu0 %v282, 104
    %v1406 = vpop.permute.xlu0 %1405
    %1407 = vrot.lane.b32.xlu0 %v285, 104
    %v1408 = vpop.permute.xlu0 %1407
    %v1412 = vsel %vm328, %v1396, 0
    %v1415 = vsel %vm328, %v1398, 0
    %1417 = vmatpush.msra.mxu0 0.0
    %1418 = vmatpush.msra.mxu0 0.0
    %1419 = vmatpush.msra.mxu0 0.0
    %1420 = vmatpush.msra.mxu0 0.0
    %1421 = vmatpush.msra.mxu0 0.0
    %1422 = vmatpush.msra.mxu0 0.0
    %1423 = vmatpush.msra.mxu0 0.0
    %1424 = vmatpush.msra.mxu0 0.0
    %1425 = vmatpush.msra.mxu0 0.0
    %1426 = vmatpush.msra.mxu0 0.0
    %1427 = vmatpush.msra.mxu0 0.0
    %1428 = vmatpush.msra.mxu0 0.0
    %1429 = vmatpush.msra.mxu0 0.0
    %1430 = vmatpush.msra.mxu0 0.0
    %1431 = vmatpush.msra.mxu0 %v1408
    %1432 = vmatpush.msra.mxu0 %v1406
    %1433 = vmatmul.f32.gmra.mxu0 %v1412
    %v1434 = vpop.f32.mrf.mxu0
    %v1435 = vadd.f32 0.0, %v1434
    %1436 = vmatmul.f32.gmra.mxu0 %v1415
    %v1437 = vpop.f32.mrf.mxu0
    %v1438 = vadd.f32 0.0, %v1437
    %1439 = vdwg.mxu0
    %v1440 = vrcp.pop %v1401
    %v1441 = vmul.f32 %v1401, %v1440
    %v1442 = vsub.f32 1.0, %v1441
    %v1443 = vmul.f32 %v1440, %v1442
    %v1444 = vadd.f32 %v1440, %v1443
    %vm1445 = vweird.f32 %v1401
    %vm1446 = vweird.f32 %v1440
    %vm1447 = vmor %vm1445, %vm1446
    %v1448 = vsel %vm1447, %v1440, %v1444
    %v1449 = vand.u32 2147483647, %v1401
    %vm1450 = vcmp.eq.f32.partialorder %v1449, 8.507059e+37
    %v1451 = vand.u32 %v1401, 2147483648
    %v1452 = vor.u32 1.1754944e-38, %v1451
    %v1453 = vsel %vm1450, %v1452, %v1448
    %v1454 = vrcp.pop %v1404
    %v1455 = vmul.f32 %v1404, %v1454
    %v1456 = vsub.f32 1.0, %v1455
    %v1457 = vmul.f32 %v1454, %v1456
    %v1458 = vadd.f32 %v1454, %v1457
    %vm1459 = vweird.f32 %v1404
    %vm1460 = vweird.f32 %v1454
    %vm1461 = vmor %vm1459, %vm1460
    %v1462 = vsel %vm1461, %v1454, %v1458
    %v1463 = vand.u32 2147483647, %v1404
    %vm1464 = vcmp.eq.f32.partialorder %v1463, 8.507059e+37
    %v1465 = vand.u32 %v1404, 2147483648
    %v1466 = vor.u32 1.1754944e-38, %v1465
    %v1467 = vsel %vm1464, %v1466, %v1462
    %v1468 = vmul.f32 %v1435, %v1453
    %v1469 = vmul.f32 %v1438, %v1467
    %v1471 = vsel %vm292, %v1468, 0
    %v1474 = vsel %vm292, %v1469, 0
    %1476 = vmatpush.msra.mxu0 0.0
    %1477 = vmatpush.msra.mxu0 0.0
    %1478 = vmatpush.msra.mxu0 0.0
    %1479 = vmatpush.msra.mxu0 0.0
    %1480 = vmatpush.msra.mxu0 0.0
    %1481 = vmatpush.msra.mxu0 0.0
    %1482 = vmatpush.msra.mxu0 0.0
    %1483 = vmatpush.msra.mxu0 0.0
    %1484 = vmatpush.msra.mxu0 0.0
    %1485 = vmatpush.msra.mxu0 0.0
    %1486 = vmatpush.msra.mxu0 0.0
    %1487 = vmatpush.msra.mxu0 0.0
    %1488 = vmatpush.msra.mxu0 0.0
    %1489 = vmatpush.msra.mxu0 0.0
    %1490 = vmatpush.msra.mxu0 0.0
    %1491 = vmatpush.msra.mxu0 %v290
    %1492 = vmatmul.f32.gmra.mxu0 %v1471
    %v1493 = vpop.f32.mrf.mxu0
    %v1494 = vadd.f32 0.0, %v1493
    %1495 = vmatmul.f32.gmra.mxu0 %v1474
    %v1496 = vpop.f32.mrf.mxu0
    %v1497 = vadd.f32 0.0, %v1496
    %1498 = vdwg.mxu0
    %v1499 = vadd.f32 %v1346, %v1494
    %v1500 = vadd.f32 %v1347, %v1497
    %v1501 = vadd.f32 %v1499, %v895
    %v1502 = vadd.f32 %v1500, %v895
    %1503 = vst.msk [vmem:[#allocation14 + $0x10] sm:$0xff] %vm147, %v1501
    %1504 = vst.msk [vmem:[#allocation14 + $0x18] sm:$0xff] %vm147, %v1502
    // Predicated region
    $region62: #{tpu_custom_call.1} parent=1 // pred_check
      _
    $region63: #{tpu_custom_call.1} parent=1 // pred_check_branch
      %1506 = sbr.rel (0) target = $region65
    $region64: #{tpu_custom_call.1} parent=1 // pred_region
      %1508 = vsyncadd [#allocation4], 0
      %s1509 = sshll.u32 [#allocation14], 4
      %s1510 = int_to_ptr.vmem [resolvable:$true] %s1509
      %s1511 = sshll.u32 %s8, 4
      %s1512 = int_to_ptr.hbm [resolvable:$true] %s1511
      %1517 = dma.vmem_to_hbm [thread:$0]  %s1510, 512, %s1512, [#allocation4], 128, 128, 8
    $region65: #{tpu_custom_call.1} parent=1 // pred_fallthru
      _
    // Predicated region
    $region66: #{tpu_custom_call.1} parent=1 // pred_check
      _
    $region67: #{tpu_custom_call.1} parent=1 // pred_check_branch
      %1519 = sbr.rel (0) target = $region69
    $region68: #{tpu_custom_call.1} parent=1 // pred_region
      %1521 = dma.done [#allocation4], 512
    $region69: #{tpu_custom_call.1} parent=1 // pred_fallthru
      _
    %1522 = vsyncpa [#allocation3], 1
    %1523 = vsyncpa [#allocation6], 1
    %1524 = vsyncpa [#allocation9], 1
    %1525 = vsyncpa [#allocation12], 1
    %1526 = vsyncpa [#allocation4], 1

</llo_original>
